<compile_context>
chip_gen: v5e
topology: v5e:2x2
jax: 0.10.0
libtpu: 0.0.40
codegen_flags: <defaults>
</compile_context>

<pallas_src>
import numpy as np
import jax
import jax.numpy as jnp
from jax import lax
from jax.experimental import pallas as pl
from jax.experimental.pallas import tpu as pltpu

B, C_IN, H_IN, W_IN = 2, 4, 16, 16
L1_C, L2_C, L3_C, L4_N = 4, 8, 16, 32
N_CLASS = 52
H8, W8 = H_IN // 8, W_IN // 8            # 2, 2
EPS = 1e-5                               # PyTorch BatchNorm default eps

# flattened padded-spatial geometry (per sample)
HP1, WP1 = H_IN + 4, W_IN + 4            # 20, 20   (k=5, pad=2)
L1 = (H_IN - 1) * WP1 + W_IN             # 316      conv-1 output lane extent
H2, W2 = H_IN // 2, W_IN // 2            # 8, 8
HP2, WP2 = H2 + 2, W2 + 2                # 10, 10   (k=3, pad=1)
L2 = (H2 - 1) * WP2 + W2                 # 78
H3, W3 = H2 // 2, W2 // 2                # 4, 4
HP3, WP3 = H3 + 2, W3 + 2                # 6, 6
L3 = (H3 - 1) * WP3 + W3                 # 22
LC2 = L2 - 1 - WP2                       # 67   width after the 2x2 max combine (layer2)
LC3 = L3 - 1 - WP3                       # 15   width after the 2x2 max combine (layer3)


def _kernel(x1_ref, w1_ref, s1_ref, t1_ref, p1_ref,
            w2_ref, s2_ref, t2_ref, sel2_ref,
            w3_ref, s3_ref, t3_ref,
            w4_ref, s4_ref, t4_ref,
            w5_ref, b5_ref, out_ref):
    f32 = jnp.float32

    def leaky(v):                         # nn.LeakyReLU() default slope 0.01
        return jnp.where(v > 0, v, 0.01 * v)

    def relu(v):
        return jnp.maximum(v, 0.0)

    # ---- layer1: conv5x5 as ONE MXU matmul on the wrapper-built im2col slab,
    #      then folded BN2d + LeakyReLU.   a1[:, y*WP1+x] = activation at (y, x).
    a1 = leaky(jnp.dot(w1_ref[...], x1_ref[0], preferred_element_type=f32)
               * s1_ref[...] + t1_ref[...])                          # (L1_C, 316)

    # ---- AvgPool2x2 + zero-padded re-embedding for layer2: one selection matmul.
    #      (columns not written by p1 come out exactly 0 == the conv padding)
    x2 = jnp.dot(a1, p1_ref[...], preferred_element_type=f32)        # (L1_C, 100)

    # conv3x3 (stride 1, 'same'): 9 per-tap MXU matmuls on lane-shifted slices of the
    # zero-padded activation, then folded BN2d + ReLU.  No scratch, no stores.
    def conv3_bn_relu(x_val, w_ref, s_ref, t_ref, wp, lout):
        cout = w_ref.shape[1]
        acc = jnp.zeros((cout, lout), f32)
        for ky in range(3):
            for kx in range(3):
                off = ky * wp + kx
                acc = acc + jnp.dot(w_ref[ky * 3 + kx], x_val[:, off:off + lout],
                                    preferred_element_type=f32)
        return relu(acc * s_ref[...] + t_ref[...])

    # ---- layer2: conv -> BN -> ReLU -> MaxPool2x2 (shifted max + selection matmul)
    a2 = conv3_bn_relu(x2, w2_ref, s2_ref, t2_ref, WP2, L2)          # (L2_C, 78)
    xc2 = jnp.maximum(a2[:, :L2 - 1], a2[:, 1:L2])                   # combine x-pairs
    yc2 = jnp.maximum(xc2[:, :LC2], xc2[:, WP2:L2 - 1])              # combine y-pairs
    x3 = jnp.dot(yc2, sel2_ref[...], preferred_element_type=f32)     # (L2_C, 36)

    # ---- layer3: conv -> BN -> ReLU -> MaxPool2x2 (kept entirely in registers)
    a3 = conv3_bn_relu(x3, w3_ref, s3_ref, t3_ref, WP3, L3)          # (L3_C, 22)
    xc3 = jnp.maximum(a3[:, :L3 - 1], a3[:, 1:L3])
    yc3 = jnp.maximum(xc3[:, :LC3], xc3[:, WP3:L3 - 1])              # (L3_C, 15)

    # ---- flatten (PyTorch NCHW order folded into w4) -> single layer4 matmul
    #      -> folded BN1d + ReLU -> layer5 matmul + bias.
    cols = tuple(2 * yo * WP3 + 2 * xo for yo in range(H8) for xo in range(W8))
    flat = jnp.concatenate([yc3[:, c:c + 1] for c in cols], axis=0)  # (64, 1)
    h4 = relu(jnp.dot(w4_ref[...], flat, preferred_element_type=f32)
              * s4_ref[...] + t4_ref[...])                           # (L4_N, 1)
    out_ref[0] = (jnp.dot(w5_ref[...], h4, preferred_element_type=f32)
                  + b5_ref[...])                                     # (N_CLASS, 1)


def _fold_bn(gamma, beta, mean, var):
    s = gamma / jnp.sqrt(var + EPS)
    return s.reshape(-1, 1), (beta - mean * s).reshape(-1, 1)


def _pool_matrices():
    # AvgPool2x2 of the layer-1 map folded together with the zero-padded (pad=1)
    # re-embedding that feeds layer-2's conv: one 0/0.25 matrix.
    p1 = np.zeros((L1, HP2 * WP2), np.float32)
    for yo in range(H2):
        for xo in range(W2):
            j = (yo + 1) * WP2 + (xo + 1)
            for dy in range(2):
                for dx in range(2):
                    p1[(2 * yo + dy) * WP1 + (2 * xo + dx), j] = 0.25
    # Column selection after the in-kernel 2x2 max combine + zero-padded re-embedding
    # that feeds layer-3's conv: one 0/1 matrix.
    s2 = np.zeros((LC2, HP3 * WP3), np.float32)
    for yo in range(H3):
        for xo in range(W3):
            s2[2 * yo * WP2 + 2 * xo, (yo + 1) * WP3 + (xo + 1)] = 1.0
    return jnp.asarray(p1), jnp.asarray(s2)


def _layer1_im2col(x_nchw):
    # (B,C,H,W) -> zero-padded, flattened, tap-stacked slab: row = tap*C_IN + ci,
    # lane = y*WP1 + x.  Pure layout plumbing done once in XLA.
    xpad = jnp.pad(x_nchw.astype(jnp.float32), ((0, 0), (0, 0), (2, 2), (2, 2)))
    xf = xpad.reshape(B, C_IN, HP1 * WP1)
    taps = [xf[:, :, ky * WP1 + kx: ky * WP1 + kx + L1]
            for ky in range(5) for kx in range(5)]
    return jnp.stack(taps, axis=1).reshape(B, 25 * C_IN, L1)


@jax.jit
def card_classifier(x_nchw, p):
    x1 = _layer1_im2col(x_nchw)
    p1m, sel2 = _pool_matrices()

    # weights permuted so every in-kernel contraction is a plain 2-D matmul
    w1m = jnp.transpose(p["w1"], (0, 2, 3, 1)).reshape(L1_C, 25 * C_IN)
    w2t = jnp.transpose(p["w2"], (2, 3, 0, 1)).reshape(9, L2_C, L1_C)
    w3t = jnp.transpose(p["w3"], (2, 3, 0, 1)).reshape(9, L3_C, L2_C)
    # PyTorch flatten order is (C,H,W); reorder to (position-major, channel-minor)
    # to match the kernel's flatten concat order.
    w4t = jnp.transpose(p["w4"].reshape(L4_N, L3_C, H8, W8),
                        (0, 2, 3, 1)).reshape(L4_N, H8 * W8 * L3_C)
    w5t = p["w5"]
    b5c = p["b5"].reshape(N_CLASS, 1)

    s1, t1 = _fold_bn(*p["bn1"])
    s2, t2 = _fold_bn(*p["bn2"])
    s3, t3 = _fold_bn(*p["bn3"])
    s4, t4 = _fold_bn(*p["bn4"])

    full2 = lambda shape: pl.BlockSpec(shape, lambda b: (0, 0))
    full3 = lambda shape: pl.BlockSpec(shape, lambda b: (0, 0, 0))

    out = pl.pallas_call(
        _kernel,
        out_shape=jax.ShapeDtypeStruct((B, N_CLASS, 1), jnp.float32),
        grid=(B,),
        in_specs=[
            pl.BlockSpec((1, 25 * C_IN, L1), lambda b: (b, 0, 0)),   # im2col input
            full2((L1_C, 25 * C_IN)), full2((L1_C, 1)), full2((L1_C, 1)),
            full2((L1, HP2 * WP2)),
            full3((9, L2_C, L1_C)), full2((L2_C, 1)), full2((L2_C, 1)),
            full2((LC2, HP3 * WP3)),
            full3((9, L3_C, L2_C)), full2((L3_C, 1)), full2((L3_C, 1)),
            full2((L4_N, H8 * W8 * L3_C)), full2((L4_N, 1)), full2((L4_N, 1)),
            full2((N_CLASS, L4_N)), full2((N_CLASS, 1)),
        ],
        out_specs=pl.BlockSpec((1, N_CLASS, 1), lambda b: (b, 0, 0)),
        compiler_params=pltpu.CompilerParams(
            dimension_semantics=("parallel",)),
    )(x1, w1m, s1, t1, p1m,
      w2t, s2, t2, sel2,
      w3t, s3, t3,
      w4t, s4, t4,
      w5t, b5c)
    return out[:, :, 0]


def init_params(key):
    ks = jax.random.split(key, 10)

    def nrm(k, shape, s=0.2):
        return jax.random.normal(k, shape, jnp.float32) * s

    def bn(k, c):
        k1, k2, k3, k4 = jax.random.split(k, 4)
        gamma = 1.0 + 0.1 * jax.random.normal(k1, (c,), jnp.float32)
        beta = 0.1 * jax.random.normal(k2, (c,), jnp.float32)
        mean = 0.1 * jax.random.normal(k3, (c,), jnp.float32)
        var = 1.0 + 0.1 * jnp.abs(jax.random.normal(k4, (c,), jnp.float32))
        return gamma, beta, mean, var

    F = L3_C * H8 * W8
    return dict(
        w1=nrm(ks[0], (L1_C, C_IN, 5, 5)), bn1=bn(ks[1], L1_C),
        w2=nrm(ks[2], (L2_C, L1_C, 3, 3)), bn2=bn(ks[3], L2_C),
        w3=nrm(ks[4], (L3_C, L2_C, 3, 3)), bn3=bn(ks[5], L3_C),
        w4=nrm(ks[6], (L4_N, F), 0.1), bn4=bn(ks[7], L4_N),
        w5=nrm(ks[8], (N_CLASS, L4_N), 0.1), b5=nrm(ks[9], (N_CLASS,), 0.1),
    )


def reference(x, p):
    # Plain-JAX reference mirroring the PyTorch forward (eval-mode BN).
    def conv(h, w, pad):
        return lax.conv_general_dilated(h, w, (1, 1), [(pad, pad), (pad, pad)],
                                        dimension_numbers=('NCHW', 'OIHW', 'NCHW'))

    def bn2d(h, bnp):
        g, b, m, v = bnp
        s = g / jnp.sqrt(v + EPS)
        return h * s[None, :, None, None] + (b - m * s)[None, :, None, None]

    def bn1d(h, bnp):
        g, b, m, v = bnp
        s = g / jnp.sqrt(v + EPS)
        return h * s[None, :] + (b - m * s)[None, :]

    def avgpool(h):
        return lax.reduce_window(h, 0.0, lax.add, (1, 1, 2, 2), (1, 1, 2, 2), 'VALID') * 0.25

    def maxpool(h):
        return lax.reduce_window(h, -jnp.inf, lax.max, (1, 1, 2, 2), (1, 1, 2, 2), 'VALID')

    h = bn2d(conv(x, p["w1"], 2), p["bn1"])
    h = avgpool(jnp.where(h > 0, h, 0.01 * h))
    h = maxpool(jnp.maximum(bn2d(conv(h, p["w2"], 1), p["bn2"]), 0.0))
    h = maxpool(jnp.maximum(bn2d(conv(h, p["w3"], 1), p["bn3"]), 0.0))
    hf = h.reshape(h.shape[0], -1)
    h4 = jnp.maximum(bn1d(hf @ p["w4"].T, p["bn4"]), 0.0)
    return h4 @ p["w5"].T + p["b5"][None, :]


if __name__ == "__main__":
    key = jax.random.PRNGKey(0)
    kx, kp = jax.random.split(key)
    x = jax.random.normal(kx, (B, C_IN, H_IN, W_IN), jnp.float32)
    params = init_params(kp)

    y = card_classifier(x, params)
    jax.block_until_ready(y)

    y_ref = reference(x, params)
    assert y.shape == (B, N_CLASS)
    assert jnp.allclose(y, y_ref, atol=2e-4, rtol=2e-4), float(jnp.max(jnp.abs(y - y_ref)))
    print("KERNEL_OK")
</pallas_src>

<mosaic_0001>
module attributes {stable_mosaic.version = 11 : i64} {
  func.func @_kernel(%arg0: i32, %arg1: memref<1x100x316xf32, #tpu.memory_space<vmem>>, %arg2: memref<4x100xf32, #tpu.memory_space<vmem>>, %arg3: memref<4x1xf32, #tpu.memory_space<vmem>>, %arg4: memref<4x1xf32, #tpu.memory_space<vmem>>, %arg5: memref<316x100xf32, #tpu.memory_space<vmem>>, %arg6: memref<9x8x4xf32, #tpu.memory_space<vmem>>, %arg7: memref<8x1xf32, #tpu.memory_space<vmem>>, %arg8: memref<8x1xf32, #tpu.memory_space<vmem>>, %arg9: memref<67x36xf32, #tpu.memory_space<vmem>>, %arg10: memref<9x16x8xf32, #tpu.memory_space<vmem>>, %arg11: memref<16x1xf32, #tpu.memory_space<vmem>>, %arg12: memref<16x1xf32, #tpu.memory_space<vmem>>, %arg13: memref<32x64xf32, #tpu.memory_space<vmem>>, %arg14: memref<32x1xf32, #tpu.memory_space<vmem>>, %arg15: memref<32x1xf32, #tpu.memory_space<vmem>>, %arg16: memref<52x32xf32, #tpu.memory_space<vmem>>, %arg17: memref<52x1xf32, #tpu.memory_space<vmem>>, %arg18: memref<1x52x1xf32, #tpu.memory_space<vmem>>) attributes {dimension_semantics = [#tpu.dimension_semantics<parallel>], iteration_bounds = array<i64: 2>, scalar_prefetch = 0 : i64, scratch_operands = 0 : i64, tpu.core_type = #tpu.core_type<tc>, window_params = [{transform_indices = @transform_0, window_bounds = array<i64: 1, 100, 316>}, {pipeline_mode = #tpu.pipeline_mode<synchronous>, transform_indices = @transform_1, window_bounds = array<i64: 4, 100>}, {pipeline_mode = #tpu.pipeline_mode<synchronous>, transform_indices = @transform_2, window_bounds = array<i64: 4, 1>}, {pipeline_mode = #tpu.pipeline_mode<synchronous>, transform_indices = @transform_3, window_bounds = array<i64: 4, 1>}, {pipeline_mode = #tpu.pipeline_mode<synchronous>, transform_indices = @transform_4, window_bounds = array<i64: 316, 100>}, {pipeline_mode = #tpu.pipeline_mode<synchronous>, transform_indices = @transform_5, window_bounds = array<i64: 9, 8, 4>}, {pipeline_mode = #tpu.pipeline_mode<synchronous>, transform_indices = @transform_6, window_bounds = array<i64: 8, 1>}, {pipeline_mode = #tpu.pipeline_mode<synchronous>, transform_indices = @transform_7, window_bounds = array<i64: 8, 1>}, {pipeline_mode = #tpu.pipeline_mode<synchronous>, transform_indices = @transform_8, window_bounds = array<i64: 67, 36>}, {pipeline_mode = #tpu.pipeline_mode<synchronous>, transform_indices = @transform_9, window_bounds = array<i64: 9, 16, 8>}, {pipeline_mode = #tpu.pipeline_mode<synchronous>, transform_indices = @transform_10, window_bounds = array<i64: 16, 1>}, {pipeline_mode = #tpu.pipeline_mode<synchronous>, transform_indices = @transform_11, window_bounds = array<i64: 16, 1>}, {pipeline_mode = #tpu.pipeline_mode<synchronous>, transform_indices = @transform_12, window_bounds = array<i64: 32, 64>}, {pipeline_mode = #tpu.pipeline_mode<synchronous>, transform_indices = @transform_13, window_bounds = array<i64: 32, 1>}, {pipeline_mode = #tpu.pipeline_mode<synchronous>, transform_indices = @transform_14, window_bounds = array<i64: 32, 1>}, {pipeline_mode = #tpu.pipeline_mode<synchronous>, transform_indices = @transform_15, window_bounds = array<i64: 52, 32>}, {pipeline_mode = #tpu.pipeline_mode<synchronous>, transform_indices = @transform_16, window_bounds = array<i64: 52, 1>}, {transform_indices = @transform_17, window_bounds = array<i64: 1, 52, 1>}]} {
    %c0 = arith.constant 0 : index
    %c0_0 = arith.constant 0 : index
    %0 = vector.load %arg2[%c0, %c0_0] : memref<4x100xf32, #tpu.memory_space<vmem>>, vector<4x100xf32>
    %c0_1 = arith.constant 0 : index
    %c0_2 = arith.constant 0 : index
    %c0_3 = arith.constant 0 : index
    %1 = vector.load %arg1[%c0_1, %c0_2, %c0_3] : memref<1x100x316xf32, #tpu.memory_space<vmem>>, vector<1x100x316xf32>
    %2 = vector.shape_cast %1 : vector<1x100x316xf32> to vector<100x316xf32>
    %cst = arith.constant dense<0.000000e+00> : vector<4x316xf32>
    %3 = tpu.matmul %0, %2, %cst {dimension_numbers = #tpu.dot_dimension_numbers<[1], [0], [0], [1], [0, 0, 1, 1], [], []>} : vector<4x100xf32>, vector<100x316xf32>, vector<4x316xf32> -> vector<4x316xf32>
    %c0_4 = arith.constant 0 : index
    %c0_5 = arith.constant 0 : index
    %4 = vector.load %arg3[%c0_4, %c0_5] : memref<4x1xf32, #tpu.memory_space<vmem>>, vector<4x1xf32>
    %5 = vector.broadcast %4 : vector<4x1xf32> to vector<4x316xf32>
    %6 = arith.mulf %3, %5 : vector<4x316xf32>
    %c0_6 = arith.constant 0 : index
    %c0_7 = arith.constant 0 : index
    %7 = vector.load %arg4[%c0_6, %c0_7] : memref<4x1xf32, #tpu.memory_space<vmem>>, vector<4x1xf32>
    %8 = vector.broadcast %7 : vector<4x1xf32> to vector<4x316xf32>
    %9 = arith.addf %6, %8 : vector<4x316xf32>
    %cst_8 = arith.constant 0.000000e+00 : f32
    %10 = vector.broadcast %cst_8 : f32 to vector<4x316xf32>
    %11 = arith.cmpf ogt, %9, %10 : vector<4x316xf32>
    %cst_9 = arith.constant 0.00999999977 : f32
    %12 = vector.broadcast %cst_9 : f32 to vector<4x316xf32>
    %13 = arith.mulf %12, %9 : vector<4x316xf32>
    %14 = arith.select %11, %9, %13 : vector<4x316xi1>, vector<4x316xf32>
    %c0_10 = arith.constant 0 : index
    %c0_11 = arith.constant 0 : index
    %15 = vector.load %arg5[%c0_10, %c0_11] : memref<316x100xf32, #tpu.memory_space<vmem>>, vector<316x100xf32>
    %cst_12 = arith.constant dense<0.000000e+00> : vector<4x100xf32>
    %16 = tpu.matmul %14, %15, %cst_12 {dimension_numbers = #tpu.dot_dimension_numbers<[1], [0], [0], [1], [0, 0, 1, 1], [], []>} : vector<4x316xf32>, vector<316x100xf32>, vector<4x100xf32> -> vector<4x100xf32>
    %cst_13 = arith.constant 0.000000e+00 : f32
    %17 = vector.broadcast %cst_13 : f32 to vector<8x78xf32>
    %c0_14 = arith.constant 0 : index
    %c0_15 = arith.constant 0 : index
    %c0_16 = arith.constant 0 : index
    %18 = vector.load %arg6[%c0_14, %c0_15, %c0_16] : memref<9x8x4xf32, #tpu.memory_space<vmem>>, vector<1x8x4xf32>
    %19 = vector.shape_cast %18 : vector<1x8x4xf32> to vector<8x4xf32>
    %20 = vector.extract_strided_slice %16 {offsets = [0, 0], sizes = [4, 78], strides = [1, 1]} : vector<4x100xf32> to vector<4x78xf32>
    %cst_17 = arith.constant dense<0.000000e+00> : vector<8x78xf32>
    %21 = tpu.matmul %19, %20, %cst_17 {dimension_numbers = #tpu.dot_dimension_numbers<[1], [0], [0], [1], [0, 0, 1, 1], [], []>} : vector<8x4xf32>, vector<4x78xf32>, vector<8x78xf32> -> vector<8x78xf32>
    %22 = arith.addf %17, %21 : vector<8x78xf32>
    %c1 = arith.constant 1 : index
    %c0_18 = arith.constant 0 : index
    %c0_19 = arith.constant 0 : index
    %23 = vector.load %arg6[%c1, %c0_18, %c0_19] : memref<9x8x4xf32, #tpu.memory_space<vmem>>, vector<1x8x4xf32>
    %24 = vector.shape_cast %23 : vector<1x8x4xf32> to vector<8x4xf32>
    %25 = vector.extract_strided_slice %16 {offsets = [0, 1], sizes = [4, 78], strides = [1, 1]} : vector<4x100xf32> to vector<4x78xf32>
    %cst_20 = arith.constant dense<0.000000e+00> : vector<8x78xf32>
    %26 = tpu.matmul %24, %25, %cst_20 {dimension_numbers = #tpu.dot_dimension_numbers<[1], [0], [0], [1], [0, 0, 1, 1], [], []>} : vector<8x4xf32>, vector<4x78xf32>, vector<8x78xf32> -> vector<8x78xf32>
    %27 = arith.addf %22, %26 : vector<8x78xf32>
    %c2 = arith.constant 2 : index
    %c0_21 = arith.constant 0 : index
    %c0_22 = arith.constant 0 : index
    %28 = vector.load %arg6[%c2, %c0_21, %c0_22] : memref<9x8x4xf32, #tpu.memory_space<vmem>>, vector<1x8x4xf32>
    %29 = vector.shape_cast %28 : vector<1x8x4xf32> to vector<8x4xf32>
    %30 = vector.extract_strided_slice %16 {offsets = [0, 2], sizes = [4, 78], strides = [1, 1]} : vector<4x100xf32> to vector<4x78xf32>
    %cst_23 = arith.constant dense<0.000000e+00> : vector<8x78xf32>
    %31 = tpu.matmul %29, %30, %cst_23 {dimension_numbers = #tpu.dot_dimension_numbers<[1], [0], [0], [1], [0, 0, 1, 1], [], []>} : vector<8x4xf32>, vector<4x78xf32>, vector<8x78xf32> -> vector<8x78xf32>
    %32 = arith.addf %27, %31 : vector<8x78xf32>
    %c3 = arith.constant 3 : index
    %c0_24 = arith.constant 0 : index
    %c0_25 = arith.constant 0 : index
    %33 = vector.load %arg6[%c3, %c0_24, %c0_25] : memref<9x8x4xf32, #tpu.memory_space<vmem>>, vector<1x8x4xf32>
    %34 = vector.shape_cast %33 : vector<1x8x4xf32> to vector<8x4xf32>
    %35 = vector.extract_strided_slice %16 {offsets = [0, 10], sizes = [4, 78], strides = [1, 1]} : vector<4x100xf32> to vector<4x78xf32>
    %cst_26 = arith.constant dense<0.000000e+00> : vector<8x78xf32>
    %36 = tpu.matmul %34, %35, %cst_26 {dimension_numbers = #tpu.dot_dimension_numbers<[1], [0], [0], [1], [0, 0, 1, 1], [], []>} : vector<8x4xf32>, vector<4x78xf32>, vector<8x78xf32> -> vector<8x78xf32>
    %37 = arith.addf %32, %36 : vector<8x78xf32>
    %c4 = arith.constant 4 : index
    %c0_27 = arith.constant 0 : index
    %c0_28 = arith.constant 0 : index
    %38 = vector.load %arg6[%c4, %c0_27, %c0_28] : memref<9x8x4xf32, #tpu.memory_space<vmem>>, vector<1x8x4xf32>
    %39 = vector.shape_cast %38 : vector<1x8x4xf32> to vector<8x4xf32>
    %40 = vector.extract_strided_slice %16 {offsets = [0, 11], sizes = [4, 78], strides = [1, 1]} : vector<4x100xf32> to vector<4x78xf32>
    %cst_29 = arith.constant dense<0.000000e+00> : vector<8x78xf32>
    %41 = tpu.matmul %39, %40, %cst_29 {dimension_numbers = #tpu.dot_dimension_numbers<[1], [0], [0], [1], [0, 0, 1, 1], [], []>} : vector<8x4xf32>, vector<4x78xf32>, vector<8x78xf32> -> vector<8x78xf32>
    %42 = arith.addf %37, %41 : vector<8x78xf32>
    %c5 = arith.constant 5 : index
    %c0_30 = arith.constant 0 : index
    %c0_31 = arith.constant 0 : index
    %43 = vector.load %arg6[%c5, %c0_30, %c0_31] : memref<9x8x4xf32, #tpu.memory_space<vmem>>, vector<1x8x4xf32>
    %44 = vector.shape_cast %43 : vector<1x8x4xf32> to vector<8x4xf32>
    %45 = vector.extract_strided_slice %16 {offsets = [0, 12], sizes = [4, 78], strides = [1, 1]} : vector<4x100xf32> to vector<4x78xf32>
    %cst_32 = arith.constant dense<0.000000e+00> : vector<8x78xf32>
    %46 = tpu.matmul %44, %45, %cst_32 {dimension_numbers = #tpu.dot_dimension_numbers<[1], [0], [0], [1], [0, 0, 1, 1], [], []>} : vector<8x4xf32>, vector<4x78xf32>, vector<8x78xf32> -> vector<8x78xf32>
    %47 = arith.addf %42, %46 : vector<8x78xf32>
    %c6 = arith.constant 6 : index
    %c0_33 = arith.constant 0 : index
    %c0_34 = arith.constant 0 : index
    %48 = vector.load %arg6[%c6, %c0_33, %c0_34] : memref<9x8x4xf32, #tpu.memory_space<vmem>>, vector<1x8x4xf32>
    %49 = vector.shape_cast %48 : vector<1x8x4xf32> to vector<8x4xf32>
    %50 = vector.extract_strided_slice %16 {offsets = [0, 20], sizes = [4, 78], strides = [1, 1]} : vector<4x100xf32> to vector<4x78xf32>
    %cst_35 = arith.constant dense<0.000000e+00> : vector<8x78xf32>
    %51 = tpu.matmul %49, %50, %cst_35 {dimension_numbers = #tpu.dot_dimension_numbers<[1], [0], [0], [1], [0, 0, 1, 1], [], []>} : vector<8x4xf32>, vector<4x78xf32>, vector<8x78xf32> -> vector<8x78xf32>
    %52 = arith.addf %47, %51 : vector<8x78xf32>
    %c7 = arith.constant 7 : index
    %c0_36 = arith.constant 0 : index
    %c0_37 = arith.constant 0 : index
    %53 = vector.load %arg6[%c7, %c0_36, %c0_37] : memref<9x8x4xf32, #tpu.memory_space<vmem>>, vector<1x8x4xf32>
    %54 = vector.shape_cast %53 : vector<1x8x4xf32> to vector<8x4xf32>
    %55 = vector.extract_strided_slice %16 {offsets = [0, 21], sizes = [4, 78], strides = [1, 1]} : vector<4x100xf32> to vector<4x78xf32>
    %cst_38 = arith.constant dense<0.000000e+00> : vector<8x78xf32>
    %56 = tpu.matmul %54, %55, %cst_38 {dimension_numbers = #tpu.dot_dimension_numbers<[1], [0], [0], [1], [0, 0, 1, 1], [], []>} : vector<8x4xf32>, vector<4x78xf32>, vector<8x78xf32> -> vector<8x78xf32>
    %57 = arith.addf %52, %56 : vector<8x78xf32>
    %c8 = arith.constant 8 : index
    %c0_39 = arith.constant 0 : index
    %c0_40 = arith.constant 0 : index
    %58 = vector.load %arg6[%c8, %c0_39, %c0_40] : memref<9x8x4xf32, #tpu.memory_space<vmem>>, vector<1x8x4xf32>
    %59 = vector.shape_cast %58 : vector<1x8x4xf32> to vector<8x4xf32>
    %60 = vector.extract_strided_slice %16 {offsets = [0, 22], sizes = [4, 78], strides = [1, 1]} : vector<4x100xf32> to vector<4x78xf32>
    %cst_41 = arith.constant dense<0.000000e+00> : vector<8x78xf32>
    %61 = tpu.matmul %59, %60, %cst_41 {dimension_numbers = #tpu.dot_dimension_numbers<[1], [0], [0], [1], [0, 0, 1, 1], [], []>} : vector<8x4xf32>, vector<4x78xf32>, vector<8x78xf32> -> vector<8x78xf32>
    %62 = arith.addf %57, %61 : vector<8x78xf32>
    %c0_42 = arith.constant 0 : index
    %c0_43 = arith.constant 0 : index
    %63 = vector.load %arg7[%c0_42, %c0_43] : memref<8x1xf32, #tpu.memory_space<vmem>>, vector<8x1xf32>
    %64 = vector.broadcast %63 : vector<8x1xf32> to vector<8x78xf32>
    %65 = arith.mulf %62, %64 : vector<8x78xf32>
    %c0_44 = arith.constant 0 : index
    %c0_45 = arith.constant 0 : index
    %66 = vector.load %arg8[%c0_44, %c0_45] : memref<8x1xf32, #tpu.memory_space<vmem>>, vector<8x1xf32>
    %67 = vector.broadcast %66 : vector<8x1xf32> to vector<8x78xf32>
    %68 = arith.addf %65, %67 : vector<8x78xf32>
    %cst_46 = arith.constant 0.000000e+00 : f32
    %69 = vector.broadcast %cst_46 : f32 to vector<8x78xf32>
    %70 = arith.maximumf %68, %69 : vector<8x78xf32>
    %71 = vector.extract_strided_slice %70 {offsets = [0, 0], sizes = [8, 77], strides = [1, 1]} : vector<8x78xf32> to vector<8x77xf32>
    %72 = vector.extract_strided_slice %70 {offsets = [0, 1], sizes = [8, 77], strides = [1, 1]} : vector<8x78xf32> to vector<8x77xf32>
    %73 = arith.maximumf %71, %72 : vector<8x77xf32>
    %74 = vector.extract_strided_slice %73 {offsets = [0, 0], sizes = [8, 67], strides = [1, 1]} : vector<8x77xf32> to vector<8x67xf32>
    %75 = vector.extract_strided_slice %73 {offsets = [0, 10], sizes = [8, 67], strides = [1, 1]} : vector<8x77xf32> to vector<8x67xf32>
    %76 = arith.maximumf %74, %75 : vector<8x67xf32>
    %c0_47 = arith.constant 0 : index
    %c0_48 = arith.constant 0 : index
    %77 = vector.load %arg9[%c0_47, %c0_48] : memref<67x36xf32, #tpu.memory_space<vmem>>, vector<67x36xf32>
    %cst_49 = arith.constant dense<0.000000e+00> : vector<8x36xf32>
    %78 = tpu.matmul %76, %77, %cst_49 {dimension_numbers = #tpu.dot_dimension_numbers<[1], [0], [0], [1], [0, 0, 1, 1], [], []>} : vector<8x67xf32>, vector<67x36xf32>, vector<8x36xf32> -> vector<8x36xf32>
    %cst_50 = arith.constant 0.000000e+00 : f32
    %79 = vector.broadcast %cst_50 : f32 to vector<16x22xf32>
    %c0_51 = arith.constant 0 : index
    %c0_52 = arith.constant 0 : index
    %c0_53 = arith.constant 0 : index
    %80 = vector.load %arg10[%c0_51, %c0_52, %c0_53] : memref<9x16x8xf32, #tpu.memory_space<vmem>>, vector<1x16x8xf32>
    %81 = vector.shape_cast %80 : vector<1x16x8xf32> to vector<16x8xf32>
    %82 = vector.extract_strided_slice %78 {offsets = [0, 0], sizes = [8, 22], strides = [1, 1]} : vector<8x36xf32> to vector<8x22xf32>
    %cst_54 = arith.constant dense<0.000000e+00> : vector<16x22xf32>
    %83 = tpu.matmul %81, %82, %cst_54 {dimension_numbers = #tpu.dot_dimension_numbers<[1], [0], [0], [1], [0, 0, 1, 1], [], []>} : vector<16x8xf32>, vector<8x22xf32>, vector<16x22xf32> -> vector<16x22xf32>
    %84 = arith.addf %79, %83 : vector<16x22xf32>
    %c1_55 = arith.constant 1 : index
    %c0_56 = arith.constant 0 : index
    %c0_57 = arith.constant 0 : index
    %85 = vector.load %arg10[%c1_55, %c0_56, %c0_57] : memref<9x16x8xf32, #tpu.memory_space<vmem>>, vector<1x16x8xf32>
    %86 = vector.shape_cast %85 : vector<1x16x8xf32> to vector<16x8xf32>
    %87 = vector.extract_strided_slice %78 {offsets = [0, 1], sizes = [8, 22], strides = [1, 1]} : vector<8x36xf32> to vector<8x22xf32>
    %cst_58 = arith.constant dense<0.000000e+00> : vector<16x22xf32>
    %88 = tpu.matmul %86, %87, %cst_58 {dimension_numbers = #tpu.dot_dimension_numbers<[1], [0], [0], [1], [0, 0, 1, 1], [], []>} : vector<16x8xf32>, vector<8x22xf32>, vector<16x22xf32> -> vector<16x22xf32>
    %89 = arith.addf %84, %88 : vector<16x22xf32>
    %c2_59 = arith.constant 2 : index
    %c0_60 = arith.constant 0 : index
    %c0_61 = arith.constant 0 : index
    %90 = vector.load %arg10[%c2_59, %c0_60, %c0_61] : memref<9x16x8xf32, #tpu.memory_space<vmem>>, vector<1x16x8xf32>
    %91 = vector.shape_cast %90 : vector<1x16x8xf32> to vector<16x8xf32>
    %92 = vector.extract_strided_slice %78 {offsets = [0, 2], sizes = [8, 22], strides = [1, 1]} : vector<8x36xf32> to vector<8x22xf32>
    %cst_62 = arith.constant dense<0.000000e+00> : vector<16x22xf32>
    %93 = tpu.matmul %91, %92, %cst_62 {dimension_numbers = #tpu.dot_dimension_numbers<[1], [0], [0], [1], [0, 0, 1, 1], [], []>} : vector<16x8xf32>, vector<8x22xf32>, vector<16x22xf32> -> vector<16x22xf32>
    %94 = arith.addf %89, %93 : vector<16x22xf32>
    %c3_63 = arith.constant 3 : index
    %c0_64 = arith.constant 0 : index
    %c0_65 = arith.constant 0 : index
    %95 = vector.load %arg10[%c3_63, %c0_64, %c0_65] : memref<9x16x8xf32, #tpu.memory_space<vmem>>, vector<1x16x8xf32>
    %96 = vector.shape_cast %95 : vector<1x16x8xf32> to vector<16x8xf32>
    %97 = vector.extract_strided_slice %78 {offsets = [0, 6], sizes = [8, 22], strides = [1, 1]} : vector<8x36xf32> to vector<8x22xf32>
    %cst_66 = arith.constant dense<0.000000e+00> : vector<16x22xf32>
    %98 = tpu.matmul %96, %97, %cst_66 {dimension_numbers = #tpu.dot_dimension_numbers<[1], [0], [0], [1], [0, 0, 1, 1], [], []>} : vector<16x8xf32>, vector<8x22xf32>, vector<16x22xf32> -> vector<16x22xf32>
    %99 = arith.addf %94, %98 : vector<16x22xf32>
    %c4_67 = arith.constant 4 : index
    %c0_68 = arith.constant 0 : index
    %c0_69 = arith.constant 0 : index
    %100 = vector.load %arg10[%c4_67, %c0_68, %c0_69] : memref<9x16x8xf32, #tpu.memory_space<vmem>>, vector<1x16x8xf32>
    %101 = vector.shape_cast %100 : vector<1x16x8xf32> to vector<16x8xf32>
    %102 = vector.extract_strided_slice %78 {offsets = [0, 7], sizes = [8, 22], strides = [1, 1]} : vector<8x36xf32> to vector<8x22xf32>
    %cst_70 = arith.constant dense<0.000000e+00> : vector<16x22xf32>
    %103 = tpu.matmul %101, %102, %cst_70 {dimension_numbers = #tpu.dot_dimension_numbers<[1], [0], [0], [1], [0, 0, 1, 1], [], []>} : vector<16x8xf32>, vector<8x22xf32>, vector<16x22xf32> -> vector<16x22xf32>
    %104 = arith.addf %99, %103 : vector<16x22xf32>
    %c5_71 = arith.constant 5 : index
    %c0_72 = arith.constant 0 : index
    %c0_73 = arith.constant 0 : index
    %105 = vector.load %arg10[%c5_71, %c0_72, %c0_73] : memref<9x16x8xf32, #tpu.memory_space<vmem>>, vector<1x16x8xf32>
    %106 = vector.shape_cast %105 : vector<1x16x8xf32> to vector<16x8xf32>
    %107 = vector.extract_strided_slice %78 {offsets = [0, 8], sizes = [8, 22], strides = [1, 1]} : vector<8x36xf32> to vector<8x22xf32>
    %cst_74 = arith.constant dense<0.000000e+00> : vector<16x22xf32>
    %108 = tpu.matmul %106, %107, %cst_74 {dimension_numbers = #tpu.dot_dimension_numbers<[1], [0], [0], [1], [0, 0, 1, 1], [], []>} : vector<16x8xf32>, vector<8x22xf32>, vector<16x22xf32> -> vector<16x22xf32>
    %109 = arith.addf %104, %108 : vector<16x22xf32>
    %c6_75 = arith.constant 6 : index
    %c0_76 = arith.constant 0 : index
    %c0_77 = arith.constant 0 : index
    %110 = vector.load %arg10[%c6_75, %c0_76, %c0_77] : memref<9x16x8xf32, #tpu.memory_space<vmem>>, vector<1x16x8xf32>
    %111 = vector.shape_cast %110 : vector<1x16x8xf32> to vector<16x8xf32>
    %112 = vector.extract_strided_slice %78 {offsets = [0, 12], sizes = [8, 22], strides = [1, 1]} : vector<8x36xf32> to vector<8x22xf32>
    %cst_78 = arith.constant dense<0.000000e+00> : vector<16x22xf32>
    %113 = tpu.matmul %111, %112, %cst_78 {dimension_numbers = #tpu.dot_dimension_numbers<[1], [0], [0], [1], [0, 0, 1, 1], [], []>} : vector<16x8xf32>, vector<8x22xf32>, vector<16x22xf32> -> vector<16x22xf32>
    %114 = arith.addf %109, %113 : vector<16x22xf32>
    %c7_79 = arith.constant 7 : index
    %c0_80 = arith.constant 0 : index
    %c0_81 = arith.constant 0 : index
    %115 = vector.load %arg10[%c7_79, %c0_80, %c0_81] : memref<9x16x8xf32, #tpu.memory_space<vmem>>, vector<1x16x8xf32>
    %116 = vector.shape_cast %115 : vector<1x16x8xf32> to vector<16x8xf32>
    %117 = vector.extract_strided_slice %78 {offsets = [0, 13], sizes = [8, 22], strides = [1, 1]} : vector<8x36xf32> to vector<8x22xf32>
    %cst_82 = arith.constant dense<0.000000e+00> : vector<16x22xf32>
    %118 = tpu.matmul %116, %117, %cst_82 {dimension_numbers = #tpu.dot_dimension_numbers<[1], [0], [0], [1], [0, 0, 1, 1], [], []>} : vector<16x8xf32>, vector<8x22xf32>, vector<16x22xf32> -> vector<16x22xf32>
    %119 = arith.addf %114, %118 : vector<16x22xf32>
    %c8_83 = arith.constant 8 : index
    %c0_84 = arith.constant 0 : index
    %c0_85 = arith.constant 0 : index
    %120 = vector.load %arg10[%c8_83, %c0_84, %c0_85] : memref<9x16x8xf32, #tpu.memory_space<vmem>>, vector<1x16x8xf32>
    %121 = vector.shape_cast %120 : vector<1x16x8xf32> to vector<16x8xf32>
    %122 = vector.extract_strided_slice %78 {offsets = [0, 14], sizes = [8, 22], strides = [1, 1]} : vector<8x36xf32> to vector<8x22xf32>
    %cst_86 = arith.constant dense<0.000000e+00> : vector<16x22xf32>
    %123 = tpu.matmul %121, %122, %cst_86 {dimension_numbers = #tpu.dot_dimension_numbers<[1], [0], [0], [1], [0, 0, 1, 1], [], []>} : vector<16x8xf32>, vector<8x22xf32>, vector<16x22xf32> -> vector<16x22xf32>
    %124 = arith.addf %119, %123 : vector<16x22xf32>
    %c0_87 = arith.constant 0 : index
    %c0_88 = arith.constant 0 : index
    %125 = vector.load %arg11[%c0_87, %c0_88] : memref<16x1xf32, #tpu.memory_space<vmem>>, vector<16x1xf32>
    %126 = vector.broadcast %125 : vector<16x1xf32> to vector<16x22xf32>
    %127 = arith.mulf %124, %126 : vector<16x22xf32>
    %c0_89 = arith.constant 0 : index
    %c0_90 = arith.constant 0 : index
    %128 = vector.load %arg12[%c0_89, %c0_90] : memref<16x1xf32, #tpu.memory_space<vmem>>, vector<16x1xf32>
    %129 = vector.broadcast %128 : vector<16x1xf32> to vector<16x22xf32>
    %130 = arith.addf %127, %129 : vector<16x22xf32>
    %cst_91 = arith.constant 0.000000e+00 : f32
    %131 = vector.broadcast %cst_91 : f32 to vector<16x22xf32>
    %132 = arith.maximumf %130, %131 : vector<16x22xf32>
    %133 = vector.extract_strided_slice %132 {offsets = [0, 0], sizes = [16, 21], strides = [1, 1]} : vector<16x22xf32> to vector<16x21xf32>
    %134 = vector.extract_strided_slice %132 {offsets = [0, 1], sizes = [16, 21], strides = [1, 1]} : vector<16x22xf32> to vector<16x21xf32>
    %135 = arith.maximumf %133, %134 : vector<16x21xf32>
    %136 = vector.extract_strided_slice %135 {offsets = [0, 0], sizes = [16, 15], strides = [1, 1]} : vector<16x21xf32> to vector<16x15xf32>
    %137 = vector.extract_strided_slice %135 {offsets = [0, 6], sizes = [16, 15], strides = [1, 1]} : vector<16x21xf32> to vector<16x15xf32>
    %138 = arith.maximumf %136, %137 : vector<16x15xf32>
    %139 = vector.extract_strided_slice %138 {offsets = [0, 0], sizes = [16, 1], strides = [1, 1]} : vector<16x15xf32> to vector<16x1xf32>
    %140 = vector.extract_strided_slice %138 {offsets = [0, 2], sizes = [16, 1], strides = [1, 1]} : vector<16x15xf32> to vector<16x1xf32>
    %141 = vector.extract_strided_slice %138 {offsets = [0, 12], sizes = [16, 1], strides = [1, 1]} : vector<16x15xf32> to vector<16x1xf32>
    %142 = vector.extract_strided_slice %138 {offsets = [0, 14], sizes = [16, 1], strides = [1, 1]} : vector<16x15xf32> to vector<16x1xf32>
    %143 = tpu.concatenate %139, %140, %141, %142 in 0 : vector<16x1xf32>, vector<16x1xf32>, vector<16x1xf32>, vector<16x1xf32> -> vector<64x1xf32>
    %c0_92 = arith.constant 0 : index
    %c0_93 = arith.constant 0 : index
    %144 = vector.load %arg13[%c0_92, %c0_93] : memref<32x64xf32, #tpu.memory_space<vmem>>, vector<32x64xf32>
    %cst_94 = arith.constant dense<0.000000e+00> : vector<32x1xf32>
    %145 = tpu.matmul %144, %143, %cst_94 {dimension_numbers = #tpu.dot_dimension_numbers<[1], [0], [0], [1], [0, 0, 1, 1], [], []>} : vector<32x64xf32>, vector<64x1xf32>, vector<32x1xf32> -> vector<32x1xf32>
    %c0_95 = arith.constant 0 : index
    %c0_96 = arith.constant 0 : index
    %146 = vector.load %arg14[%c0_95, %c0_96] : memref<32x1xf32, #tpu.memory_space<vmem>>, vector<32x1xf32>
    %147 = arith.mulf %145, %146 : vector<32x1xf32>
    %c0_97 = arith.constant 0 : index
    %c0_98 = arith.constant 0 : index
    %148 = vector.load %arg15[%c0_97, %c0_98] : memref<32x1xf32, #tpu.memory_space<vmem>>, vector<32x1xf32>
    %149 = arith.addf %147, %148 : vector<32x1xf32>
    %cst_99 = arith.constant 0.000000e+00 : f32
    %150 = vector.broadcast %cst_99 : f32 to vector<32x1xf32>
    %151 = arith.maximumf %149, %150 : vector<32x1xf32>
    %c0_100 = arith.constant 0 : index
    %c0_101 = arith.constant 0 : index
    %152 = vector.load %arg16[%c0_100, %c0_101] : memref<52x32xf32, #tpu.memory_space<vmem>>, vector<52x32xf32>
    %cst_102 = arith.constant dense<0.000000e+00> : vector<52x1xf32>
    %153 = tpu.matmul %152, %151, %cst_102 {dimension_numbers = #tpu.dot_dimension_numbers<[1], [0], [0], [1], [0, 0, 1, 1], [], []>} : vector<52x32xf32>, vector<32x1xf32>, vector<52x1xf32> -> vector<52x1xf32>
    %c0_103 = arith.constant 0 : index
    %c0_104 = arith.constant 0 : index
    %154 = vector.load %arg17[%c0_103, %c0_104] : memref<52x1xf32, #tpu.memory_space<vmem>>, vector<52x1xf32>
    %155 = arith.addf %153, %154 : vector<52x1xf32>
    %c0_105 = arith.constant 0 : index
    %c0_106 = arith.constant 0 : index
    %c0_107 = arith.constant 0 : index
    %156 = vector.load %arg18[%c0_105, %c0_106, %c0_107] : memref<1x52x1xf32, #tpu.memory_space<vmem>>, vector<1x52x1xf32>
    %157 = vector.shape_cast %156 : vector<1x52x1xf32> to vector<52x1xf32>
    %158 = vector.shape_cast %155 : vector<52x1xf32> to vector<1x52x1xf32>
    tpu.vector_store %arg18[%c0_105, %c0_106, %c0_107], %158 {strides = array<i32>} : memref<1x52x1xf32, #tpu.memory_space<vmem>>, vector<1x52x1xf32>,
    return
  }
  func.func @transform_0(%arg0: i32) -> (i32, i32, i32) {
    %c0_i32 = arith.constant 0 : i32
    %c0_i32_0 = arith.constant 0 : i32
    %c0_i32_1 = arith.constant 0 : i32
    return %arg0, %c0_i32, %c0_i32_0 : i32, i32, i32
  }
  func.func @transform_1(%arg0: i32) -> (i32, i32) {
    %c0_i32 = arith.constant 0 : i32
    %c0_i32_0 = arith.constant 0 : i32
    %c0_i32_1 = arith.constant 0 : i32
    return %c0_i32, %c0_i32_0 : i32, i32
  }
  func.func @transform_2(%arg0: i32) -> (i32, i32) {
    %c0_i32 = arith.constant 0 : i32
    %c0_i32_0 = arith.constant 0 : i32
    %c0_i32_1 = arith.constant 0 : i32
    return %c0_i32, %c0_i32_0 : i32, i32
  }
  func.func @transform_3(%arg0: i32) -> (i32, i32) {
    %c0_i32 = arith.constant 0 : i32
    %c0_i32_0 = arith.constant 0 : i32
    %c0_i32_1 = arith.constant 0 : i32
    return %c0_i32, %c0_i32_0 : i32, i32
  }
  func.func @transform_4(%arg0: i32) -> (i32, i32) {
    %c0_i32 = arith.constant 0 : i32
    %c0_i32_0 = arith.constant 0 : i32
    %c0_i32_1 = arith.constant 0 : i32
    return %c0_i32, %c0_i32_0 : i32, i32
  }
  func.func @transform_5(%arg0: i32) -> (i32, i32, i32) {
    %c0_i32 = arith.constant 0 : i32
    %c0_i32_0 = arith.constant 0 : i32
    %c0_i32_1 = arith.constant 0 : i32
    %c0_i32_2 = arith.constant 0 : i32
    return %c0_i32, %c0_i32_0, %c0_i32_1 : i32, i32, i32
  }
  func.func @transform_6(%arg0: i32) -> (i32, i32) {
    %c0_i32 = arith.constant 0 : i32
    %c0_i32_0 = arith.constant 0 : i32
    %c0_i32_1 = arith.constant 0 : i32
    return %c0_i32, %c0_i32_0 : i32, i32
  }
  func.func @transform_7(%arg0: i32) -> (i32, i32) {
    %c0_i32 = arith.constant 0 : i32
    %c0_i32_0 = arith.constant 0 : i32
    %c0_i32_1 = arith.constant 0 : i32
    return %c0_i32, %c0_i32_0 : i32, i32
  }
  func.func @transform_8(%arg0: i32) -> (i32, i32) {
    %c0_i32 = arith.constant 0 : i32
    %c0_i32_0 = arith.constant 0 : i32
    %c0_i32_1 = arith.constant 0 : i32
    return %c0_i32, %c0_i32_0 : i32, i32
  }
  func.func @transform_9(%arg0: i32) -> (i32, i32, i32) {
    %c0_i32 = arith.constant 0 : i32
    %c0_i32_0 = arith.constant 0 : i32
    %c0_i32_1 = arith.constant 0 : i32
    %c0_i32_2 = arith.constant 0 : i32
    return %c0_i32, %c0_i32_0, %c0_i32_1 : i32, i32, i32
  }
  func.func @transform_10(%arg0: i32) -> (i32, i32) {
    %c0_i32 = arith.constant 0 : i32
    %c0_i32_0 = arith.constant 0 : i32
    %c0_i32_1 = arith.constant 0 : i32
    return %c0_i32, %c0_i32_0 : i32, i32
  }
  func.func @transform_11(%arg0: i32) -> (i32, i32) {
    %c0_i32 = arith.constant 0 : i32
    %c0_i32_0 = arith.constant 0 : i32
    %c0_i32_1 = arith.constant 0 : i32
    return %c0_i32, %c0_i32_0 : i32, i32
  }
  func.func @transform_12(%arg0: i32) -> (i32, i32) {
    %c0_i32 = arith.constant 0 : i32
    %c0_i32_0 = arith.constant 0 : i32
    %c0_i32_1 = arith.constant 0 : i32
    return %c0_i32, %c0_i32_0 : i32, i32
  }
  func.func @transform_13(%arg0: i32) -> (i32, i32) {
    %c0_i32 = arith.constant 0 : i32
    %c0_i32_0 = arith.constant 0 : i32
    %c0_i32_1 = arith.constant 0 : i32
    return %c0_i32, %c0_i32_0 : i32, i32
  }
  func.func @transform_14(%arg0: i32) -> (i32, i32) {
    %c0_i32 = arith.constant 0 : i32
    %c0_i32_0 = arith.constant 0 : i32
    %c0_i32_1 = arith.constant 0 : i32
    return %c0_i32, %c0_i32_0 : i32, i32
  }
  func.func @transform_15(%arg0: i32) -> (i32, i32) {
    %c0_i32 = arith.constant 0 : i32
    %c0_i32_0 = arith.constant 0 : i32
    %c0_i32_1 = arith.constant 0 : i32
    return %c0_i32, %c0_i32_0 : i32, i32
  }
  func.func @transform_16(%arg0: i32) -> (i32, i32) {
    %c0_i32 = arith.constant 0 : i32
    %c0_i32_0 = arith.constant 0 : i32
    %c0_i32_1 = arith.constant 0 : i32
    return %c0_i32, %c0_i32_0 : i32, i32
  }
  func.func @transform_17(%arg0: i32) -> (i32, i32, i32) {
    %c0_i32 = arith.constant 0 : i32
    %c0_i32_0 = arith.constant 0 : i32
    %c0_i32_1 = arith.constant 0 : i32
    return %arg0, %c0_i32, %c0_i32_0 : i32, i32, i32
  }
}

</mosaic_0001>

<llo_original>
// kernel: card_classifier.1
$region0: #{card_classifier.1}
  #allocation0 [shape = 'u32[]', space=smem, size = 0x4, offset = 0x4, fixed_abs, tag = 'smem constant byte address 0x4 - core index']
  #allocation1 [shape = 'u32[72,128]{1,0:T(1,128)}', space=vmem, size = 0x9000, scoped, tag = 'internal scratch']
  %s0 = inlined_call_operand.vmem [shape: f32[2,100,316], index: 0, kind: input, shape index: {}]
  %s1 = inlined_call_operand.vmem [shape: f32[4,100], index: 1, kind: input, shape index: {}]
  %s2 = inlined_call_operand.vmem [shape: f32[4,1], index: 2, kind: input, shape index: {}]
  %s3 = inlined_call_operand.vmem [shape: f32[4,1], index: 3, kind: input, shape index: {}]
  %s4 = inlined_call_operand.vmem [shape: f32[316,100], index: 4, kind: input, shape index: {}]
  %s5 = inlined_call_operand.vmem [shape: f32[9,8,4], index: 5, kind: input, shape index: {}]
  %s6 = inlined_call_operand.vmem [shape: f32[8,1], index: 6, kind: input, shape index: {}]
  %s7 = inlined_call_operand.vmem [shape: f32[8,1], index: 7, kind: input, shape index: {}]
  %s8 = inlined_call_operand.vmem [shape: f32[67,36], index: 8, kind: input, shape index: {}]
  %s9 = inlined_call_operand.vmem [shape: f32[9,16,8], index: 9, kind: input, shape index: {}]
  %s10 = inlined_call_operand.vmem [shape: f32[16,1], index: 10, kind: input, shape index: {}]
  %s11 = inlined_call_operand.vmem [shape: f32[16,1], index: 11, kind: input, shape index: {}]
  %s12 = inlined_call_operand.vmem [shape: f32[32,64], index: 12, kind: input, shape index: {}]
  %s13 = inlined_call_operand.vmem [shape: f32[32,1], index: 13, kind: input, shape index: {}]
  %s14 = inlined_call_operand.vmem [shape: f32[32,1], index: 14, kind: input, shape index: {}]
  %s15 = inlined_call_operand.vmem [shape: f32[52,32], index: 15, kind: input, shape index: {}]
  %s16 = inlined_call_operand.vmem [shape: f32[52,1], index: 16, kind: input, shape index: {}]
  %s17 = inlined_call_operand.vmem [shape: f32[2,52,1], index: 17, kind: output, shape index: {}]
  %s18 = sld [smem:[#allocation0]]
  $region101: #{card_classifier.1} parent=0
    _
  %s20 = ssub.s32 1, %s18
  %s21 = scalar_select 0, %s20, %s18
  loop: start=0, step=1, limit=4
  $region2: #{card_classifier.1} parent=0 // loop_pre_header
    _
  $region3: #{card_classifier.1} parent=0 // loop_header
    %s23 = sphi 0, %s27
    %p24 = scmp.ge.s32.totalorder %s23, 4
    %s33 = sphi 0, %s35
    %s36 = sphi 0, %s33
    %s37 = sphi 0, %s36
    %s53 = sphi 0, %s37
    %s57 = sphi 0, %s57
    %s59 = sphi 0, %s57
    %s60 = sphi 0, %s59
    %s74 = sphi 0, %s60
    %s78 = sphi 0, %s78
    %s80 = sphi 0, %s78
    %s81 = sphi 0, %s80
    %s95 = sphi 0, %s81
    %s99 = sphi 0, %s99
    %s101 = sphi 0, %s99
    %s102 = sphi 0, %s101
    %s116 = sphi 0, %s102
    %s120 = sphi 0, %s120
    %s122 = sphi 0, %s120
    %s123 = sphi 0, %s122
    %s137 = sphi 0, %s123
    %s141 = sphi 0, %s141
    %s143 = sphi 0, %s141
    %s144 = sphi 0, %s143
    %s158 = sphi 0, %s144
    %s162 = sphi 0, %s162
    %s164 = sphi 0, %s162
    %s165 = sphi 0, %s164
    %s179 = sphi 0, %s165
    %s183 = sphi 0, %s183
    %s185 = sphi 0, %s183
    %s186 = sphi 0, %s185
    %s200 = sphi 0, %s186
    %s204 = sphi 0, %s204
    %s206 = sphi 0, %s204
    %s207 = sphi 0, %s206
    %s221 = sphi 0, %s207
    %s225 = sphi 0, %s225
    %s227 = sphi 0, %s225
    %s228 = sphi 0, %s227
    %s242 = sphi 0, %s228
    %s246 = sphi 0, %s246
    %s248 = sphi 0, %s246
    %s249 = sphi 0, %s248
    %s263 = sphi 0, %s249
    %s267 = sphi 0, %s267
    %s269 = sphi 0, %s267
    %s270 = sphi 0, %s269
    %s284 = sphi 0, %s270
    %s288 = sphi 0, %s288
    %s290 = sphi 0, %s288
    %s291 = sphi 0, %s290
    %s305 = sphi 0, %s291
    %s309 = sphi 0, %s309
    %s311 = sphi 0, %s309
    %s312 = sphi 0, %s311
    %s326 = sphi 0, %s312
    %s330 = sphi 0, %s330
    %s332 = sphi 0, %s330
    %s333 = sphi 0, %s332
    %s347 = sphi 0, %s333
    %s351 = sphi 0, %s351
    %s353 = sphi 0, %s351
    %s354 = sphi 0, %s353
    %s368 = sphi 0, %s354
    %s372 = sphi 0, %s372
    %s374 = sphi 0, %s372
    %s375 = sphi 0, %s374
    %s389 = sphi 0, %s375
    %s395 = sphi 0, %s397
    %s398 = sphi 0, %s395
    %s399 = sphi 0, %s398
    %s415 = sphi 0, %s399
  $region4: #{card_classifier.1} parent=0 // loop_header_branch
    %26 = sbr.rel (%p24) target = $region8
  $region5: #{card_classifier.1} parent=0 // loop_body
    %s28 = ssub.s32 %s23, 1
    %s29 = ssub.s32 %s23, 2
    %s30 = sadd.s32 %s23, 1
    %s31 = ssub.s32 %s23, %s30
    %p32 = scmp.eq.s32.totalorder %s31, 0
    %s34 = sadd.s32 %s33, 1
    %s35 = scalar_select %p32, %s33, %s34
    %p38 = pneg %p32
    %p39 = scmp.eq.s32.totalorder %s23, 1
    %p40 = por %p38, %p39
    %p41 = scmp.ne.s32.totalorder %s33, %s36
    %p42 = scmp.eq.s32.totalorder %s23, 0
    %p43 = por %p41, %p42
    %p44 = scmp.ne.s32.totalorder %s33, %s36
    %p45 = scmp.eq.s32.totalorder %s28, 1
    %p46 = por %p44, %p45
    %p47 = scmp.ne.s32.totalorder %s36, %s37
    %p48 = scmp.eq.s32.totalorder %s28, 0
    %p49 = por %p47, %p48
    %p50 = scmp.ne.s32.totalorder %s36, %s37
    %p51 = scmp.eq.s32.totalorder %s29, 1
    %p52 = por %p50, %p51
    %p54 = scmp.ne.s32.totalorder %s37, %s53
    %p55 = scmp.eq.s32.totalorder %s29, 0
    %p56 = por %p54, %p55
    %s58 = sadd.s32 %s57, 1
    %p61 = scmp.eq.s32.totalorder %s23, 1
    %p62 = scmp.ne.s32.totalorder %s57, %s59
    %p63 = scmp.eq.s32.totalorder %s23, 0
    %p64 = por %p62, %p63
    %p65 = scmp.ne.s32.totalorder %s57, %s59
    %p66 = scmp.eq.s32.totalorder %s28, 1
    %p67 = por %p65, %p66
    %p68 = scmp.ne.s32.totalorder %s59, %s60
    %p69 = scmp.eq.s32.totalorder %s28, 0
    %p70 = por %p68, %p69
    %p71 = scmp.ne.s32.totalorder %s59, %s60
    %p72 = scmp.eq.s32.totalorder %s29, 1
    %p73 = por %p71, %p72
    %p75 = scmp.ne.s32.totalorder %s60, %s74
    %p76 = scmp.eq.s32.totalorder %s29, 0
    %p77 = por %p75, %p76
    %s79 = sadd.s32 %s78, 1
    %p82 = scmp.eq.s32.totalorder %s23, 1
    %p83 = scmp.ne.s32.totalorder %s78, %s80
    %p84 = scmp.eq.s32.totalorder %s23, 0
    %p85 = por %p83, %p84
    %p86 = scmp.ne.s32.totalorder %s78, %s80
    %p87 = scmp.eq.s32.totalorder %s28, 1
    %p88 = por %p86, %p87
    %p89 = scmp.ne.s32.totalorder %s80, %s81
    %p90 = scmp.eq.s32.totalorder %s28, 0
    %p91 = por %p89, %p90
    %p92 = scmp.ne.s32.totalorder %s80, %s81
    %p93 = scmp.eq.s32.totalorder %s29, 1
    %p94 = por %p92, %p93
    %p96 = scmp.ne.s32.totalorder %s81, %s95
    %p97 = scmp.eq.s32.totalorder %s29, 0
    %p98 = por %p96, %p97
    %s100 = sadd.s32 %s99, 1
    %p103 = scmp.eq.s32.totalorder %s23, 1
    %p104 = scmp.ne.s32.totalorder %s99, %s101
    %p105 = scmp.eq.s32.totalorder %s23, 0
    %p106 = por %p104, %p105
    %p107 = scmp.ne.s32.totalorder %s99, %s101
    %p108 = scmp.eq.s32.totalorder %s28, 1
    %p109 = por %p107, %p108
    %p110 = scmp.ne.s32.totalorder %s101, %s102
    %p111 = scmp.eq.s32.totalorder %s28, 0
    %p112 = por %p110, %p111
    %p113 = scmp.ne.s32.totalorder %s101, %s102
    %p114 = scmp.eq.s32.totalorder %s29, 1
    %p115 = por %p113, %p114
    %p117 = scmp.ne.s32.totalorder %s102, %s116
    %p118 = scmp.eq.s32.totalorder %s29, 0
    %p119 = por %p117, %p118
    %s121 = sadd.s32 %s120, 1
    %p124 = scmp.eq.s32.totalorder %s23, 1
    %p125 = scmp.ne.s32.totalorder %s120, %s122
    %p126 = scmp.eq.s32.totalorder %s23, 0
    %p127 = por %p125, %p126
    %p128 = scmp.ne.s32.totalorder %s120, %s122
    %p129 = scmp.eq.s32.totalorder %s28, 1
    %p130 = por %p128, %p129
    %p131 = scmp.ne.s32.totalorder %s122, %s123
    %p132 = scmp.eq.s32.totalorder %s28, 0
    %p133 = por %p131, %p132
    %p134 = scmp.ne.s32.totalorder %s122, %s123
    %p135 = scmp.eq.s32.totalorder %s29, 1
    %p136 = por %p134, %p135
    %p138 = scmp.ne.s32.totalorder %s123, %s137
    %p139 = scmp.eq.s32.totalorder %s29, 0
    %p140 = por %p138, %p139
    %s142 = sadd.s32 %s141, 1
    %p145 = scmp.eq.s32.totalorder %s23, 1
    %p146 = scmp.ne.s32.totalorder %s141, %s143
    %p147 = scmp.eq.s32.totalorder %s23, 0
    %p148 = por %p146, %p147
    %p149 = scmp.ne.s32.totalorder %s141, %s143
    %p150 = scmp.eq.s32.totalorder %s28, 1
    %p151 = por %p149, %p150
    %p152 = scmp.ne.s32.totalorder %s143, %s144
    %p153 = scmp.eq.s32.totalorder %s28, 0
    %p154 = por %p152, %p153
    %p155 = scmp.ne.s32.totalorder %s143, %s144
    %p156 = scmp.eq.s32.totalorder %s29, 1
    %p157 = por %p155, %p156
    %p159 = scmp.ne.s32.totalorder %s144, %s158
    %p160 = scmp.eq.s32.totalorder %s29, 0
    %p161 = por %p159, %p160
    %s163 = sadd.s32 %s162, 1
    %p166 = scmp.eq.s32.totalorder %s23, 1
    %p167 = scmp.ne.s32.totalorder %s162, %s164
    %p168 = scmp.eq.s32.totalorder %s23, 0
    %p169 = por %p167, %p168
    %p170 = scmp.ne.s32.totalorder %s162, %s164
    %p171 = scmp.eq.s32.totalorder %s28, 1
    %p172 = por %p170, %p171
    %p173 = scmp.ne.s32.totalorder %s164, %s165
    %p174 = scmp.eq.s32.totalorder %s28, 0
    %p175 = por %p173, %p174
    %p176 = scmp.ne.s32.totalorder %s164, %s165
    %p177 = scmp.eq.s32.totalorder %s29, 1
    %p178 = por %p176, %p177
    %p180 = scmp.ne.s32.totalorder %s165, %s179
    %p181 = scmp.eq.s32.totalorder %s29, 0
    %p182 = por %p180, %p181
    %s184 = sadd.s32 %s183, 1
    %p187 = scmp.eq.s32.totalorder %s23, 1
    %p188 = scmp.ne.s32.totalorder %s183, %s185
    %p189 = scmp.eq.s32.totalorder %s23, 0
    %p190 = por %p188, %p189
    %p191 = scmp.ne.s32.totalorder %s183, %s185
    %p192 = scmp.eq.s32.totalorder %s28, 1
    %p193 = por %p191, %p192
    %p194 = scmp.ne.s32.totalorder %s185, %s186
    %p195 = scmp.eq.s32.totalorder %s28, 0
    %p196 = por %p194, %p195
    %p197 = scmp.ne.s32.totalorder %s185, %s186
    %p198 = scmp.eq.s32.totalorder %s29, 1
    %p199 = por %p197, %p198
    %p201 = scmp.ne.s32.totalorder %s186, %s200
    %p202 = scmp.eq.s32.totalorder %s29, 0
    %p203 = por %p201, %p202
    %s205 = sadd.s32 %s204, 1
    %p208 = scmp.eq.s32.totalorder %s23, 1
    %p209 = scmp.ne.s32.totalorder %s204, %s206
    %p210 = scmp.eq.s32.totalorder %s23, 0
    %p211 = por %p209, %p210
    %p212 = scmp.ne.s32.totalorder %s204, %s206
    %p213 = scmp.eq.s32.totalorder %s28, 1
    %p214 = por %p212, %p213
    %p215 = scmp.ne.s32.totalorder %s206, %s207
    %p216 = scmp.eq.s32.totalorder %s28, 0
    %p217 = por %p215, %p216
    %p218 = scmp.ne.s32.totalorder %s206, %s207
    %p219 = scmp.eq.s32.totalorder %s29, 1
    %p220 = por %p218, %p219
    %p222 = scmp.ne.s32.totalorder %s207, %s221
    %p223 = scmp.eq.s32.totalorder %s29, 0
    %p224 = por %p222, %p223
    %s226 = sadd.s32 %s225, 1
    %p229 = scmp.eq.s32.totalorder %s23, 1
    %p230 = scmp.ne.s32.totalorder %s225, %s227
    %p231 = scmp.eq.s32.totalorder %s23, 0
    %p232 = por %p230, %p231
    %p233 = scmp.ne.s32.totalorder %s225, %s227
    %p234 = scmp.eq.s32.totalorder %s28, 1
    %p235 = por %p233, %p234
    %p236 = scmp.ne.s32.totalorder %s227, %s228
    %p237 = scmp.eq.s32.totalorder %s28, 0
    %p238 = por %p236, %p237
    %p239 = scmp.ne.s32.totalorder %s227, %s228
    %p240 = scmp.eq.s32.totalorder %s29, 1
    %p241 = por %p239, %p240
    %p243 = scmp.ne.s32.totalorder %s228, %s242
    %p244 = scmp.eq.s32.totalorder %s29, 0
    %p245 = por %p243, %p244
    %s247 = sadd.s32 %s246, 1
    %p250 = scmp.eq.s32.totalorder %s23, 1
    %p251 = scmp.ne.s32.totalorder %s246, %s248
    %p252 = scmp.eq.s32.totalorder %s23, 0
    %p253 = por %p251, %p252
    %p254 = scmp.ne.s32.totalorder %s246, %s248
    %p255 = scmp.eq.s32.totalorder %s28, 1
    %p256 = por %p254, %p255
    %p257 = scmp.ne.s32.totalorder %s248, %s249
    %p258 = scmp.eq.s32.totalorder %s28, 0
    %p259 = por %p257, %p258
    %p260 = scmp.ne.s32.totalorder %s248, %s249
    %p261 = scmp.eq.s32.totalorder %s29, 1
    %p262 = por %p260, %p261
    %p264 = scmp.ne.s32.totalorder %s249, %s263
    %p265 = scmp.eq.s32.totalorder %s29, 0
    %p266 = por %p264, %p265
    %s268 = sadd.s32 %s267, 1
    %p271 = scmp.eq.s32.totalorder %s23, 1
    %p272 = scmp.ne.s32.totalorder %s267, %s269
    %p273 = scmp.eq.s32.totalorder %s23, 0
    %p274 = por %p272, %p273
    %p275 = scmp.ne.s32.totalorder %s267, %s269
    %p276 = scmp.eq.s32.totalorder %s28, 1
    %p277 = por %p275, %p276
    %p278 = scmp.ne.s32.totalorder %s269, %s270
    %p279 = scmp.eq.s32.totalorder %s28, 0
    %p280 = por %p278, %p279
    %p281 = scmp.ne.s32.totalorder %s269, %s270
    %p282 = scmp.eq.s32.totalorder %s29, 1
    %p283 = por %p281, %p282
    %p285 = scmp.ne.s32.totalorder %s270, %s284
    %p286 = scmp.eq.s32.totalorder %s29, 0
    %p287 = por %p285, %p286
    %s289 = sadd.s32 %s288, 1
    %p292 = scmp.eq.s32.totalorder %s23, 1
    %p293 = scmp.ne.s32.totalorder %s288, %s290
    %p294 = scmp.eq.s32.totalorder %s23, 0
    %p295 = por %p293, %p294
    %p296 = scmp.ne.s32.totalorder %s288, %s290
    %p297 = scmp.eq.s32.totalorder %s28, 1
    %p298 = por %p296, %p297
    %p299 = scmp.ne.s32.totalorder %s290, %s291
    %p300 = scmp.eq.s32.totalorder %s28, 0
    %p301 = por %p299, %p300
    %p302 = scmp.ne.s32.totalorder %s290, %s291
    %p303 = scmp.eq.s32.totalorder %s29, 1
    %p304 = por %p302, %p303
    %p306 = scmp.ne.s32.totalorder %s291, %s305
    %p307 = scmp.eq.s32.totalorder %s29, 0
    %p308 = por %p306, %p307
    %s310 = sadd.s32 %s309, 1
    %p313 = scmp.eq.s32.totalorder %s23, 1
    %p314 = scmp.ne.s32.totalorder %s309, %s311
    %p315 = scmp.eq.s32.totalorder %s23, 0
    %p316 = por %p314, %p315
    %p317 = scmp.ne.s32.totalorder %s309, %s311
    %p318 = scmp.eq.s32.totalorder %s28, 1
    %p319 = por %p317, %p318
    %p320 = scmp.ne.s32.totalorder %s311, %s312
    %p321 = scmp.eq.s32.totalorder %s28, 0
    %p322 = por %p320, %p321
    %p323 = scmp.ne.s32.totalorder %s311, %s312
    %p324 = scmp.eq.s32.totalorder %s29, 1
    %p325 = por %p323, %p324
    %p327 = scmp.ne.s32.totalorder %s312, %s326
    %p328 = scmp.eq.s32.totalorder %s29, 0
    %p329 = por %p327, %p328
    %s331 = sadd.s32 %s330, 1
    %p334 = scmp.eq.s32.totalorder %s23, 1
    %p335 = scmp.ne.s32.totalorder %s330, %s332
    %p336 = scmp.eq.s32.totalorder %s23, 0
    %p337 = por %p335, %p336
    %p338 = scmp.ne.s32.totalorder %s330, %s332
    %p339 = scmp.eq.s32.totalorder %s28, 1
    %p340 = por %p338, %p339
    %p341 = scmp.ne.s32.totalorder %s332, %s333
    %p342 = scmp.eq.s32.totalorder %s28, 0
    %p343 = por %p341, %p342
    %p344 = scmp.ne.s32.totalorder %s332, %s333
    %p345 = scmp.eq.s32.totalorder %s29, 1
    %p346 = por %p344, %p345
    %p348 = scmp.ne.s32.totalorder %s333, %s347
    %p349 = scmp.eq.s32.totalorder %s29, 0
    %p350 = por %p348, %p349
    %s352 = sadd.s32 %s351, 1
    %p355 = scmp.eq.s32.totalorder %s23, 1
    %p356 = scmp.ne.s32.totalorder %s351, %s353
    %p357 = scmp.eq.s32.totalorder %s23, 0
    %p358 = por %p356, %p357
    %p359 = scmp.ne.s32.totalorder %s351, %s353
    %p360 = scmp.eq.s32.totalorder %s28, 1
    %p361 = por %p359, %p360
    %p362 = scmp.ne.s32.totalorder %s353, %s354
    %p363 = scmp.eq.s32.totalorder %s28, 0
    %p364 = por %p362, %p363
    %p365 = scmp.ne.s32.totalorder %s353, %s354
    %p366 = scmp.eq.s32.totalorder %s29, 1
    %p367 = por %p365, %p366
    %p369 = scmp.ne.s32.totalorder %s354, %s368
    %p370 = scmp.eq.s32.totalorder %s29, 0
    %p371 = por %p369, %p370
    %s373 = sadd.s32 %s372, 1
    %p376 = scmp.eq.s32.totalorder %s23, 1
    %p377 = scmp.ne.s32.totalorder %s372, %s374
    %p378 = scmp.eq.s32.totalorder %s23, 0
    %p379 = por %p377, %p378
    %p380 = scmp.ne.s32.totalorder %s372, %s374
    %p381 = scmp.eq.s32.totalorder %s28, 1
    %p382 = por %p380, %p381
    %p383 = scmp.ne.s32.totalorder %s374, %s375
    %p384 = scmp.eq.s32.totalorder %s28, 0
    %p385 = por %p383, %p384
    %p386 = scmp.ne.s32.totalorder %s374, %s375
    %p387 = scmp.eq.s32.totalorder %s29, 1
    %p388 = por %p386, %p387
    %p390 = scmp.ne.s32.totalorder %s375, %s389
    %p391 = scmp.eq.s32.totalorder %s29, 0
    %p392 = por %p390, %p391
    %s393 = ssub.s32 %s23, %s30
    %p394 = scmp.eq.s32.totalorder %s393, 0
    %s396 = sadd.s32 %s395, 1
    %s397 = scalar_select %p394, %s395, %s396
    %p400 = pneg %p394
    %p401 = scmp.eq.s32.totalorder %s23, 1
    %p402 = por %p400, %p401
    %p403 = scmp.ne.s32.totalorder %s395, %s398
    %p404 = scmp.eq.s32.totalorder %s23, 0
    %p405 = por %p403, %p404
    %p406 = scmp.ne.s32.totalorder %s395, %s398
    %p407 = scmp.eq.s32.totalorder %s28, 1
    %p408 = por %p406, %p407
    %p409 = scmp.ne.s32.totalorder %s398, %s399
    %p410 = scmp.eq.s32.totalorder %s28, 0
    %p411 = por %p409, %p410
    %p412 = scmp.ne.s32.totalorder %s398, %s399
    %p413 = scmp.eq.s32.totalorder %s29, 1
    %p414 = por %p412, %p413
    %p416 = scmp.ne.s32.totalorder %s399, %s415
    %p417 = scmp.eq.s32.totalorder %s29, 0
    %p418 = por %p416, %p417
    %p419 = scmp.le.s32.totalorder 1, %s23
    %p420 = scmp.lt.s32.totalorder %s23, 3
    %p421 = pnand %p419, %p420
    %p422 = pneg %p421
    // Predicated region
    $region9: #{card_classifier.1} parent=5 // pred_check
      _
    $region10: #{card_classifier.1} parent=5 // pred_check_branch
      %424 = sbr.rel (%p421) target = $region12
    $region11: #{card_classifier.1} parent=5 // pred_region
      %s425 = ssub.s32 %s23, 1
      // Predicated region
      $region13: #{card_classifier.1} parent=11 // pred_check
        %p426 = pneg %p70
      $region14: #{card_classifier.1} parent=11 // pred_check_branch
        %428 = sbr.rel (%p426) target = $region16
      $region15: #{card_classifier.1} parent=11 // pred_region
        _
      $region16: #{card_classifier.1} parent=11 // pred_fallthru
        _
      // Predicated region
      $region17: #{card_classifier.1} parent=11 // pred_check
        %p429 = pneg %p91
      $region18: #{card_classifier.1} parent=11 // pred_check_branch
        %431 = sbr.rel (%p429) target = $region20
      $region19: #{card_classifier.1} parent=11 // pred_region
        _
      $region20: #{card_classifier.1} parent=11 // pred_fallthru
        _
      // Predicated region
      $region21: #{card_classifier.1} parent=11 // pred_check
        %p432 = pneg %p112
      $region22: #{card_classifier.1} parent=11 // pred_check_branch
        %434 = sbr.rel (%p432) target = $region24
      $region23: #{card_classifier.1} parent=11 // pred_region
        _
      $region24: #{card_classifier.1} parent=11 // pred_fallthru
        _
      // Predicated region
      $region25: #{card_classifier.1} parent=11 // pred_check
        %p435 = pneg %p133
      $region26: #{card_classifier.1} parent=11 // pred_check_branch
        %437 = sbr.rel (%p435) target = $region28
      $region27: #{card_classifier.1} parent=11 // pred_region
        _
      $region28: #{card_classifier.1} parent=11 // pred_fallthru
        _
      // Predicated region
      $region29: #{card_classifier.1} parent=11 // pred_check
        %p438 = pneg %p154
      $region30: #{card_classifier.1} parent=11 // pred_check_branch
        %440 = sbr.rel (%p438) target = $region32
      $region31: #{card_classifier.1} parent=11 // pred_region
        _
      $region32: #{card_classifier.1} parent=11 // pred_fallthru
        _
      // Predicated region
      $region33: #{card_classifier.1} parent=11 // pred_check
        %p441 = pneg %p175
      $region34: #{card_classifier.1} parent=11 // pred_check_branch
        %443 = sbr.rel (%p441) target = $region36
      $region35: #{card_classifier.1} parent=11 // pred_region
        _
      $region36: #{card_classifier.1} parent=11 // pred_fallthru
        _
      // Predicated region
      $region37: #{card_classifier.1} parent=11 // pred_check
        %p444 = pneg %p196
      $region38: #{card_classifier.1} parent=11 // pred_check_branch
        %446 = sbr.rel (%p444) target = $region40
      $region39: #{card_classifier.1} parent=11 // pred_region
        _
      $region40: #{card_classifier.1} parent=11 // pred_fallthru
        _
      // Predicated region
      $region41: #{card_classifier.1} parent=11 // pred_check
        %p447 = pneg %p217
      $region42: #{card_classifier.1} parent=11 // pred_check_branch
        %449 = sbr.rel (%p447) target = $region44
      $region43: #{card_classifier.1} parent=11 // pred_region
        _
      $region44: #{card_classifier.1} parent=11 // pred_fallthru
        _
      // Predicated region
      $region45: #{card_classifier.1} parent=11 // pred_check
        %p450 = pneg %p238
      $region46: #{card_classifier.1} parent=11 // pred_check_branch
        %452 = sbr.rel (%p450) target = $region48
      $region47: #{card_classifier.1} parent=11 // pred_region
        _
      $region48: #{card_classifier.1} parent=11 // pred_fallthru
        _
      // Predicated region
      $region49: #{card_classifier.1} parent=11 // pred_check
        %p453 = pneg %p259
      $region50: #{card_classifier.1} parent=11 // pred_check_branch
        %455 = sbr.rel (%p453) target = $region52
      $region51: #{card_classifier.1} parent=11 // pred_region
        _
      $region52: #{card_classifier.1} parent=11 // pred_fallthru
        _
      // Predicated region
      $region53: #{card_classifier.1} parent=11 // pred_check
        %p456 = pneg %p280
      $region54: #{card_classifier.1} parent=11 // pred_check_branch
        %458 = sbr.rel (%p456) target = $region56
      $region55: #{card_classifier.1} parent=11 // pred_region
        _
      $region56: #{card_classifier.1} parent=11 // pred_fallthru
        _
      // Predicated region
      $region57: #{card_classifier.1} parent=11 // pred_check
        %p459 = pneg %p301
      $region58: #{card_classifier.1} parent=11 // pred_check_branch
        %461 = sbr.rel (%p459) target = $region60
      $region59: #{card_classifier.1} parent=11 // pred_region
        _
      $region60: #{card_classifier.1} parent=11 // pred_fallthru
        _
      // Predicated region
      $region61: #{card_classifier.1} parent=11 // pred_check
        %p462 = pneg %p322
      $region62: #{card_classifier.1} parent=11 // pred_check_branch
        %464 = sbr.rel (%p462) target = $region64
      $region63: #{card_classifier.1} parent=11 // pred_region
        _
      $region64: #{card_classifier.1} parent=11 // pred_fallthru
        _
      // Predicated region
      $region65: #{card_classifier.1} parent=11 // pred_check
        %p465 = pneg %p343
      $region66: #{card_classifier.1} parent=11 // pred_check_branch
        %467 = sbr.rel (%p465) target = $region68
      $region67: #{card_classifier.1} parent=11 // pred_region
        _
      $region68: #{card_classifier.1} parent=11 // pred_fallthru
        _
      // Predicated region
      $region69: #{card_classifier.1} parent=11 // pred_check
        %p468 = pneg %p364
      $region70: #{card_classifier.1} parent=11 // pred_check_branch
        %470 = sbr.rel (%p468) target = $region72
      $region71: #{card_classifier.1} parent=11 // pred_region
        _
      $region72: #{card_classifier.1} parent=11 // pred_fallthru
        _
      // Predicated region
      $region73: #{card_classifier.1} parent=11 // pred_check
        %p471 = pneg %p385
      $region74: #{card_classifier.1} parent=11 // pred_check_branch
        %473 = sbr.rel (%p471) target = $region76
      $region75: #{card_classifier.1} parent=11 // pred_region
        _
      $region76: #{card_classifier.1} parent=11 // pred_fallthru
        _
    $region12: #{card_classifier.1} parent=5 // pred_fallthru
      _
    %p474 = scmp.lt.s32.totalorder %s23, 2
    // Predicated region
    $region77: #{card_classifier.1} parent=5 // pred_check
      %p475 = pneg %p474
    $region78: #{card_classifier.1} parent=5 // pred_check_branch
      %477 = sbr.rel (%p475) target = $region80
    $region79: #{card_classifier.1} parent=5 // pred_region
      // Predicated region
      $region81: #{card_classifier.1} parent=79 // pred_check
        %p478 = pneg %p43
      $region82: #{card_classifier.1} parent=79 // pred_check_branch
        %480 = sbr.rel (%p478) target = $region84
      $region83: #{card_classifier.1} parent=79 // pred_region
        %p481 = scmp.lt.s32.totalorder %s23, 1
        %s482 = scalar_select %p481, %s23, 1
        %s483 = smul.addr %s482, 39
        %s484 = smul.addr %s483, 8
        %s485 = scalar_lea.vmem %s0, %s484
      $region84: #{card_classifier.1} parent=79 // pred_fallthru
        _
    $region80: #{card_classifier.1} parent=5 // pred_fallthru
      _
    %p486 = scmp.le.s32.totalorder 1, %s23
    %p487 = scmp.lt.s32.totalorder %s23, 3
    %p488 = pnand %p486, %p487
    %p489 = pneg %p488
    // Predicated region
    $region85: #{card_classifier.1} parent=5 // pred_check
      _
    $region86: #{card_classifier.1} parent=5 // pred_check_branch
      %491 = sbr.rel (%p488) target = $region88
    $region87: #{card_classifier.1} parent=5 // pred_region
      %s492 = ssub.s32 %s23, 1
      %p493 = scmp.lt.s32.totalorder %s28, 1
      %s494 = scalar_select %p493, %s28, 1
      %s495 = smul.addr %s494, 39
      %s496 = smul.addr %s495, 8
      %s497 = scalar_lea.vmem %s0, %s496
      %p498 = pneg %p49
      %p499 = pneg %p46
      %p500 = pneg %p70
      %p501 = pneg %p67
      %p502 = pneg %p91
      %p503 = pneg %p88
      %p504 = pneg %p112
      %p505 = pneg %p109
      %p506 = pneg %p133
      %p507 = pneg %p130
      %p508 = pneg %p154
      %p509 = pneg %p151
      %p510 = pneg %p175
      %p511 = pneg %p172
      %p512 = pneg %p196
      %p513 = pneg %p193
      %p514 = pneg %p217
      %p515 = pneg %p214
      %p516 = pneg %p238
      %p517 = pneg %p235
      %p518 = pneg %p259
      %p519 = pneg %p256
      %p520 = pneg %p280
      %p521 = pneg %p277
      %p522 = pneg %p301
      %p523 = pneg %p298
      %p524 = pneg %p322
      %p525 = pneg %p319
      %p526 = pneg %p343
      %p527 = pneg %p340
      %p528 = pneg %p364
      %p529 = pneg %p361
      %p530 = pneg %p385
      %p531 = pneg %p382
      %p532 = pneg %p411
      %p533 = pneg %p408
      %p534 = scmp.lt.s32.totalorder %s28, 1
      %s535 = scalar_select %p534, %s28, 1
      %s536 = smul.addr %s535, 7
      %s537 = smul.addr %s536, 8
      %s538 = scalar_lea.vmem %s17, %s537
      %p539 = scmp.lt.s32.totalorder %s28, 1
      %s540 = scalar_select %p539, %s28, 1
      %s541 = smul.addr %s540, 39
      %s542 = smul.addr %s541, 8
      %s543 = scalar_lea.vmem %s0, %s542
      %p544 = scmp.lt.s32.totalorder %s28, 1
      %s545 = scalar_select %p544, %s28, 1
      %s546 = smul.addr %s545, 7
      %s547 = smul.addr %s546, 8
      %s548 = scalar_lea.vmem %s17, %s547
      %v549 = vld [vmem:[%s1] sm:$0xf]
      %v550 = vld [vmem:[%s543] sm:$0xff]
      %v551 = vld [vmem:[%s543 + $0x8] sm:$0xff]
      %v552 = vld [vmem:[%s543 + $0x10] sm:$0xff]
      %v553 = vld [vmem:[%s543 + $0x18] sm:$0xff]
      %v554 = vld [vmem:[%s543 + $0x20] sm:$0xff]
      %v555 = vld [vmem:[%s543 + $0x28] sm:$0xff]
      %v556 = vld [vmem:[%s543 + $0x30] sm:$0xff]
      %v557 = vld [vmem:[%s543 + $0x38] sm:$0xff]
      %v558 = vld [vmem:[%s543 + $0x40] sm:$0xff]
      %v559 = vld [vmem:[%s543 + $0x48] sm:$0xff]
      %v560 = vld [vmem:[%s543 + $0x50] sm:$0xff]
      %v561 = vld [vmem:[%s543 + $0x58] sm:$0xff]
      %v562 = vld [vmem:[%s543 + $0x60] sm:$0xff]
      %v563 = vld [vmem:[%s543 + $0x68] sm:$0xff]
      %v564 = vld [vmem:[%s543 + $0x70] sm:$0xff]
      %v565 = vld [vmem:[%s543 + $0x78] sm:$0xff]
      %v566 = vld [vmem:[%s543 + $0x80] sm:$0xff]
      %v567 = vld [vmem:[%s543 + $0x88] sm:$0xff]
      %v568 = vld [vmem:[%s543 + $0x90] sm:$0xff]
      %v569 = vld [vmem:[%s543 + $0x98] sm:$0xff]
      %v570 = vld [vmem:[%s543 + $0xa0] sm:$0xff]
      %v571 = vld [vmem:[%s543 + $0xa8] sm:$0xff]
      %v572 = vld [vmem:[%s543 + $0xb0] sm:$0xff]
      %v573 = vld [vmem:[%s543 + $0xb8] sm:$0xff]
      %v574 = vld [vmem:[%s543 + $0xc0] sm:$0xff]
      %v575 = vld [vmem:[%s543 + $0xc8] sm:$0xff]
      %v576 = vld [vmem:[%s543 + $0xd0] sm:$0xff]
      %v577 = vld [vmem:[%s543 + $0xd8] sm:$0xff]
      %v578 = vld [vmem:[%s543 + $0xe0] sm:$0xff]
      %v579 = vld [vmem:[%s543 + $0xe8] sm:$0xff]
      %v580 = vld [vmem:[%s543 + $0xf0] sm:$0xff]
      %v581 = vld [vmem:[%s543 + $0xf8] sm:$0xff]
      %v582 = vld [vmem:[%s543 + $0x100] sm:$0xff]
      %v583 = vld [vmem:[%s543 + $0x108] sm:$0xff]
      %v584 = vld [vmem:[%s543 + $0x110] sm:$0xff]
      %v585 = vld [vmem:[%s543 + $0x118] sm:$0xff]
      %v586 = vld [vmem:[%s543 + $0x120] sm:$0xf]
      %v587 = vld [vmem:[%s543 + $0x128] sm:$0xf]
      %v588 = vld [vmem:[%s543 + $0x130] sm:$0xf]
      %vm589 = vcmask 818176
      %v591 = vsel %vm589, %v549, 0
      %vm593 = vcmask 1043456
      %v595 = vsel %vm593, %v586, 0
      %v598 = vsel %vm593, %v587, 0
      %v601 = vsel %vm593, %v588, 0
      %603 = vmatpush.msra.mxu0 0.0
      %604 = vmatpush.msra.mxu0 0.0
      %605 = vmatpush.msra.mxu0 0.0
      %606 = vmatpush.msra.mxu0 %v595
      %607 = vmatpush.msra.mxu0 %v583
      %608 = vmatpush.msra.mxu0 %v580
      %609 = vmatpush.msra.mxu0 %v577
      %610 = vmatpush.msra.mxu0 %v574
      %611 = vmatpush.msra.mxu0 %v571
      %612 = vmatpush.msra.mxu0 %v568
      %613 = vmatpush.msra.mxu0 %v565
      %614 = vmatpush.msra.mxu0 %v562
      %615 = vmatpush.msra.mxu0 %v559
      %616 = vmatpush.msra.mxu0 %v556
      %617 = vmatpush.msra.mxu0 %v553
      %618 = vmatpush.msra.mxu0 %v550
      %619 = vmatmul.f32.gmra.mxu0 %v591
      %v620 = vpop.f32.mrf.mxu0
      %v621 = vadd.f32 0.0, %v620
      %622 = vdwg.mxu0
      %623 = vmatpush.msra.mxu0 0.0
      %624 = vmatpush.msra.mxu0 0.0
      %625 = vmatpush.msra.mxu0 0.0
      %626 = vmatpush.msra.mxu0 %v598
      %627 = vmatpush.msra.mxu0 %v584
      %628 = vmatpush.msra.mxu0 %v581
      %629 = vmatpush.msra.mxu0 %v578
      %630 = vmatpush.msra.mxu0 %v575
      %631 = vmatpush.msra.mxu0 %v572
      %632 = vmatpush.msra.mxu0 %v569
      %633 = vmatpush.msra.mxu0 %v566
      %634 = vmatpush.msra.mxu0 %v563
      %635 = vmatpush.msra.mxu0 %v560
      %636 = vmatpush.msra.mxu0 %v557
      %637 = vmatpush.msra.mxu0 %v554
      %638 = vmatpush.msra.mxu0 %v551
      %639 = vmatmul.f32.gmra.mxu0 %v591
      %v640 = vpop.f32.mrf.mxu0
      %v641 = vadd.f32 0.0, %v640
      %642 = vdwg.mxu0
      %643 = vmatpush.msra.mxu0 0.0
      %644 = vmatpush.msra.mxu0 0.0
      %645 = vmatpush.msra.mxu0 0.0
      %646 = vmatpush.msra.mxu0 %v601
      %647 = vmatpush.msra.mxu0 %v585
      %648 = vmatpush.msra.mxu0 %v582
      %649 = vmatpush.msra.mxu0 %v579
      %650 = vmatpush.msra.mxu0 %v576
      %651 = vmatpush.msra.mxu0 %v573
      %652 = vmatpush.msra.mxu0 %v570
      %653 = vmatpush.msra.mxu0 %v567
      %654 = vmatpush.msra.mxu0 %v564
      %655 = vmatpush.msra.mxu0 %v561
      %656 = vmatpush.msra.mxu0 %v558
      %657 = vmatpush.msra.mxu0 %v555
      %658 = vmatpush.msra.mxu0 %v552
      %659 = vmatmul.f32.gmra.mxu0 %v591
      %v660 = vpop.f32.mrf.mxu0
      %v661 = vadd.f32 0.0, %v660
      %662 = vdwg.mxu0
      %v663 = vld [vmem:[%s2] sm:$0xf]
      %665 = vset.pattern.permute.xlu0 0
      %666 = vperm.xlu0 %665, %v663
      %v667 = vpop.permute.xlu0 %666
      %v669 = vmul.f32 %v621, %v667
      %v670 = vmul.f32 %v641, %v667
      %v671 = vmul.f32 %v661, %v667
      %v672 = vld [vmem:[%s3] sm:$0xf]
      %674 = vset.pattern.permute.xlu0 0
      %675 = vperm.xlu0 %674, %v672
      %v676 = vpop.permute.xlu0 %675
      %v678 = vadd.f32 %v669, %v676
      %v679 = vadd.f32 %v670, %v676
      %v680 = vadd.f32 %v671, %v676
      %vm681 = vcmp.gt.f32.partialorder %v678, 0.0
      %vm682 = vcmp.gt.f32.partialorder %v679, 0.0
      %vm683 = vcmp.gt.f32.partialorder %v680, 0.0
      %v684 = vmul.f32 %v678, 0.01
      %v685 = vmul.f32 %v679, 0.01
      %v686 = vmul.f32 %v680, 0.01
      %v687 = vsel %vm681, %v678, %v684
      %v688 = vsel %vm682, %v679, %v685
      %v689 = vsel %vm683, %v680, %v686
      %v690 = vld [vmem:[%s4] sm:$0xff]
      %v691 = vld [vmem:[%s4 + $0x8] sm:$0xff]
      %v692 = vld [vmem:[%s4 + $0x10] sm:$0xff]
      %v693 = vld [vmem:[%s4 + $0x18] sm:$0xff]
      %v694 = vld [vmem:[%s4 + $0x20] sm:$0xff]
      %v695 = vld [vmem:[%s4 + $0x28] sm:$0xff]
      %v696 = vld [vmem:[%s4 + $0x30] sm:$0xff]
      %v697 = vld [vmem:[%s4 + $0x38] sm:$0xff]
      %v698 = vld [vmem:[%s4 + $0x40] sm:$0xff]
      %v699 = vld [vmem:[%s4 + $0x48] sm:$0xff]
      %v700 = vld [vmem:[%s4 + $0x50] sm:$0xff]
      %v701 = vld [vmem:[%s4 + $0x58] sm:$0xff]
      %v702 = vld [vmem:[%s4 + $0x60] sm:$0xff]
      %v703 = vld [vmem:[%s4 + $0x68] sm:$0xff]
      %v704 = vld [vmem:[%s4 + $0x70] sm:$0xff]
      %v705 = vld [vmem:[%s4 + $0x78] sm:$0xff]
      %v706 = vld [vmem:[%s4 + $0x80] sm:$0xff]
      %v707 = vld [vmem:[%s4 + $0x88] sm:$0xff]
      %v708 = vld [vmem:[%s4 + $0x90] sm:$0xff]
      %v709 = vld [vmem:[%s4 + $0x98] sm:$0xff]
      %v710 = vld [vmem:[%s4 + $0xa0] sm:$0xff]
      %v711 = vld [vmem:[%s4 + $0xa8] sm:$0xff]
      %v712 = vld [vmem:[%s4 + $0xb0] sm:$0xff]
      %v713 = vld [vmem:[%s4 + $0xb8] sm:$0xff]
      %v714 = vld [vmem:[%s4 + $0xc0] sm:$0xff]
      %v715 = vld [vmem:[%s4 + $0xc8] sm:$0xff]
      %v716 = vld [vmem:[%s4 + $0xd0] sm:$0xff]
      %v717 = vld [vmem:[%s4 + $0xd8] sm:$0xff]
      %v718 = vld [vmem:[%s4 + $0xe0] sm:$0xff]
      %v719 = vld [vmem:[%s4 + $0xe8] sm:$0xff]
      %v720 = vld [vmem:[%s4 + $0xf0] sm:$0xff]
      %v721 = vld [vmem:[%s4 + $0xf8] sm:$0xff]
      %v722 = vld [vmem:[%s4 + $0x100] sm:$0xff]
      %v723 = vld [vmem:[%s4 + $0x108] sm:$0xff]
      %v724 = vld [vmem:[%s4 + $0x110] sm:$0xff]
      %v725 = vld [vmem:[%s4 + $0x118] sm:$0xff]
      %v726 = vld [vmem:[%s4 + $0x120] sm:$0xff]
      %v727 = vld [vmem:[%s4 + $0x128] sm:$0xff]
      %v728 = vld [vmem:[%s4 + $0x130] sm:$0xff]
      %v729 = vld [vmem:[%s4 + $0x138] sm:$0xf]
      %vm730 = vcmask 490496
      %v732 = vsel %vm730, %v689, 0
      %v735 = vsel %vm593, %v729, 0
      %737 = vmatpush.msra.mxu0 %v705
      %738 = vmatpush.msra.mxu0 %v704
      %739 = vmatpush.msra.mxu0 %v703
      %740 = vmatpush.msra.mxu0 %v702
      %741 = vmatpush.msra.mxu0 %v701
      %742 = vmatpush.msra.mxu0 %v700
      %743 = vmatpush.msra.mxu0 %v699
      %744 = vmatpush.msra.mxu0 %v698
      %745 = vmatpush.msra.mxu0 %v697
      %746 = vmatpush.msra.mxu0 %v696
      %747 = vmatpush.msra.mxu0 %v695
      %748 = vmatpush.msra.mxu0 %v694
      %749 = vmatpush.msra.mxu0 %v693
      %750 = vmatpush.msra.mxu0 %v692
      %751 = vmatpush.msra.mxu0 %v691
      %752 = vmatpush.msra.mxu0 %v690
      %753 = vmatmul.f32.gmra.mxu0 %v687
      %v754 = vpop.f32.mrf.mxu0
      %v755 = vadd.f32 0.0, %v754
      %756 = vdwg.mxu0
      %757 = vmatpush.msra.mxu0 %v721
      %758 = vmatpush.msra.mxu0 %v720
      %759 = vmatpush.msra.mxu0 %v719
      %760 = vmatpush.msra.mxu0 %v718
      %761 = vmatpush.msra.mxu0 %v717
      %762 = vmatpush.msra.mxu0 %v716
      %763 = vmatpush.msra.mxu0 %v715
      %764 = vmatpush.msra.mxu0 %v714
      %765 = vmatpush.msra.mxu0 %v713
      %766 = vmatpush.msra.mxu0 %v712
      %767 = vmatpush.msra.mxu0 %v711
      %768 = vmatpush.msra.mxu0 %v710
      %769 = vmatpush.msra.mxu0 %v709
      %770 = vmatpush.msra.mxu0 %v708
      %771 = vmatpush.msra.mxu0 %v707
      %772 = vmatpush.msra.mxu0 %v706
      %773 = vmatmul.f32.gmra.mxu0 %v688
      %v774 = vpop.f32.mrf.mxu0
      %v775 = vadd.f32 %v755, %v774
      %776 = vdwg.mxu0
      %777 = vmatpush.msra.mxu0 0.0
      %778 = vmatpush.msra.mxu0 0.0
      %779 = vmatpush.msra.mxu0 0.0
      %780 = vmatpush.msra.mxu0 0.0
      %781 = vmatpush.msra.mxu0 0.0
      %782 = vmatpush.msra.mxu0 0.0
      %783 = vmatpush.msra.mxu0 0.0
      %784 = vmatpush.msra.mxu0 0.0
      %785 = vmatpush.msra.mxu0 %v735
      %786 = vmatpush.msra.mxu0 %v728
      %787 = vmatpush.msra.mxu0 %v727
      %788 = vmatpush.msra.mxu0 %v726
      %789 = vmatpush.msra.mxu0 %v725
      %790 = vmatpush.msra.mxu0 %v724
      %791 = vmatpush.msra.mxu0 %v723
      %792 = vmatpush.msra.mxu0 %v722
      %793 = vmatmul.f32.gmra.mxu0 %v732
      %v794 = vpop.f32.mrf.mxu0
      %v795 = vadd.f32 %v775, %v794
      %796 = vdwg.mxu0
      %v797 = vld [vmem:[%s5] sm:$0xff]
      %s798 = scalar_lea.vmem %s5, 8
      %v799 = vld [vmem:[%s798] sm:$0xff]
      %801 = vrot.lane.b32.xlu0 %v795, 127
      %v802 = vpop.permute.xlu0 %801
      %vm803 = vcmask 31744
      %v805 = vsel %vm803, %v799, 0
      %v807 = vsel %vm593, %v802, 0
      %809 = vmatpush.msra.mxu0 0.0
      %810 = vmatpush.msra.mxu0 0.0
      %811 = vmatpush.msra.mxu0 0.0
      %812 = vmatpush.msra.mxu0 0.0
      %813 = vmatpush.msra.mxu0 0.0
      %814 = vmatpush.msra.mxu0 0.0
      %815 = vmatpush.msra.mxu0 0.0
      %816 = vmatpush.msra.mxu0 0.0
      %817 = vmatpush.msra.mxu0 0.0
      %818 = vmatpush.msra.mxu0 0.0
      %819 = vmatpush.msra.mxu0 0.0
      %820 = vmatpush.msra.mxu0 0.0
      %821 = vmatpush.msra.mxu0 0.0
      %822 = vmatpush.msra.mxu0 0.0
      %823 = vmatpush.msra.mxu0 0.0
      %824 = vmatpush.msra.mxu0 %v807
      %825 = vmatmul.f32.gmra.mxu0 %v805
      %v826 = vpop.f32.mrf.mxu0
      %v827 = vadd.f32 0.0, %v826
      %828 = vdwg.mxu0
      %v830 = vsel %vm803, %v797, 0
      %v832 = vsel %vm593, %v795, 0
      %834 = vmatpush.msra.mxu0 0.0
      %835 = vmatpush.msra.mxu0 0.0
      %836 = vmatpush.msra.mxu0 0.0
      %837 = vmatpush.msra.mxu0 0.0
      %838 = vmatpush.msra.mxu0 0.0
      %839 = vmatpush.msra.mxu0 0.0
      %840 = vmatpush.msra.mxu0 0.0
      %841 = vmatpush.msra.mxu0 0.0
      %842 = vmatpush.msra.mxu0 0.0
      %843 = vmatpush.msra.mxu0 0.0
      %844 = vmatpush.msra.mxu0 0.0
      %845 = vmatpush.msra.mxu0 0.0
      %846 = vmatpush.msra.mxu0 0.0
      %847 = vmatpush.msra.mxu0 0.0
      %848 = vmatpush.msra.mxu0 0.0
      %849 = vmatpush.msra.mxu0 %v832
      %850 = vmatmul.f32.gmra.mxu0 %v830
      %v851 = vpop.f32.mrf.mxu0
      %v852 = vadd.f32 %v827, %v851
      %853 = vdwg.mxu0
      %s854 = scalar_lea.vmem %s5, 16
      %v855 = vld [vmem:[%s854] sm:$0xff]
      %856 = vrot.lane.b32.xlu0 %v795, 126
      %v857 = vpop.permute.xlu0 %856
      %v859 = vsel %vm803, %v855, 0
      %v861 = vsel %vm593, %v857, 0
      %863 = vmatpush.msra.mxu0 0.0
      %864 = vmatpush.msra.mxu0 0.0
      %865 = vmatpush.msra.mxu0 0.0
      %866 = vmatpush.msra.mxu0 0.0
      %867 = vmatpush.msra.mxu0 0.0
      %868 = vmatpush.msra.mxu0 0.0
      %869 = vmatpush.msra.mxu0 0.0
      %870 = vmatpush.msra.mxu0 0.0
      %871 = vmatpush.msra.mxu0 0.0
      %872 = vmatpush.msra.mxu0 0.0
      %873 = vmatpush.msra.mxu0 0.0
      %874 = vmatpush.msra.mxu0 0.0
      %875 = vmatpush.msra.mxu0 0.0
      %876 = vmatpush.msra.mxu0 0.0
      %877 = vmatpush.msra.mxu0 0.0
      %878 = vmatpush.msra.mxu0 %v861
      %879 = vmatmul.f32.gmra.mxu0 %v859
      %v880 = vpop.f32.mrf.mxu0
      %v881 = vadd.f32 0.0, %v880
      %882 = vdwg.mxu0
      %v883 = vadd.f32 %v852, %v881
      %s884 = scalar_lea.vmem %s5, 24
      %v885 = vld [vmem:[%s884] sm:$0xff]
      %886 = vrot.lane.b32.xlu0 %v795, 118
      %v887 = vpop.permute.xlu0 %886
      %v889 = vsel %vm803, %v885, 0
      %v891 = vsel %vm593, %v887, 0
      %893 = vmatpush.msra.mxu0 0.0
      %894 = vmatpush.msra.mxu0 0.0
      %895 = vmatpush.msra.mxu0 0.0
      %896 = vmatpush.msra.mxu0 0.0
      %897 = vmatpush.msra.mxu0 0.0
      %898 = vmatpush.msra.mxu0 0.0
      %899 = vmatpush.msra.mxu0 0.0
      %900 = vmatpush.msra.mxu0 0.0
      %901 = vmatpush.msra.mxu0 0.0
      %902 = vmatpush.msra.mxu0 0.0
      %903 = vmatpush.msra.mxu0 0.0
      %904 = vmatpush.msra.mxu0 0.0
      %905 = vmatpush.msra.mxu0 0.0
      %906 = vmatpush.msra.mxu0 0.0
      %907 = vmatpush.msra.mxu0 0.0
      %908 = vmatpush.msra.mxu0 %v891
      %909 = vmatmul.f32.gmra.mxu0 %v889
      %v910 = vpop.f32.mrf.mxu0
      %v911 = vadd.f32 0.0, %v910
      %912 = vdwg.mxu0
      %v913 = vadd.f32 %v883, %v911
      %s914 = scalar_lea.vmem %s5, 32
      %v915 = vld [vmem:[%s914] sm:$0xff]
      %916 = vrot.lane.b32.xlu0 %v795, 117
      %v917 = vpop.permute.xlu0 %916
      %v919 = vsel %vm803, %v915, 0
      %v921 = vsel %vm593, %v917, 0
      %923 = vmatpush.msra.mxu0 0.0
      %924 = vmatpush.msra.mxu0 0.0
      %925 = vmatpush.msra.mxu0 0.0
      %926 = vmatpush.msra.mxu0 0.0
      %927 = vmatpush.msra.mxu0 0.0
      %928 = vmatpush.msra.mxu0 0.0
      %929 = vmatpush.msra.mxu0 0.0
      %930 = vmatpush.msra.mxu0 0.0
      %931 = vmatpush.msra.mxu0 0.0
      %932 = vmatpush.msra.mxu0 0.0
      %933 = vmatpush.msra.mxu0 0.0
      %934 = vmatpush.msra.mxu0 0.0
      %935 = vmatpush.msra.mxu0 0.0
      %936 = vmatpush.msra.mxu0 0.0
      %937 = vmatpush.msra.mxu0 0.0
      %938 = vmatpush.msra.mxu0 %v921
      %939 = vmatmul.f32.gmra.mxu0 %v919
      %v940 = vpop.f32.mrf.mxu0
      %v941 = vadd.f32 0.0, %v940
      %942 = vdwg.mxu0
      %v943 = vadd.f32 %v913, %v941
      %s944 = scalar_lea.vmem %s5, 40
      %v945 = vld [vmem:[%s944] sm:$0xff]
      %946 = vrot.lane.b32.xlu0 %v795, 116
      %v947 = vpop.permute.xlu0 %946
      %v949 = vsel %vm803, %v945, 0
      %v951 = vsel %vm593, %v947, 0
      %953 = vmatpush.msra.mxu0 0.0
      %954 = vmatpush.msra.mxu0 0.0
      %955 = vmatpush.msra.mxu0 0.0
      %956 = vmatpush.msra.mxu0 0.0
      %957 = vmatpush.msra.mxu0 0.0
      %958 = vmatpush.msra.mxu0 0.0
      %959 = vmatpush.msra.mxu0 0.0
      %960 = vmatpush.msra.mxu0 0.0
      %961 = vmatpush.msra.mxu0 0.0
      %962 = vmatpush.msra.mxu0 0.0
      %963 = vmatpush.msra.mxu0 0.0
      %964 = vmatpush.msra.mxu0 0.0
      %965 = vmatpush.msra.mxu0 0.0
      %966 = vmatpush.msra.mxu0 0.0
      %967 = vmatpush.msra.mxu0 0.0
      %968 = vmatpush.msra.mxu0 %v951
      %969 = vmatmul.f32.gmra.mxu0 %v949
      %v970 = vpop.f32.mrf.mxu0
      %v971 = vadd.f32 0.0, %v970
      %972 = vdwg.mxu0
      %v973 = vadd.f32 %v943, %v971
      %s974 = scalar_lea.vmem %s5, 48
      %v975 = vld [vmem:[%s974] sm:$0xff]
      %976 = vrot.lane.b32.xlu0 %v795, 108
      %v977 = vpop.permute.xlu0 %976
      %v979 = vsel %vm803, %v975, 0
      %v981 = vsel %vm593, %v977, 0
      %983 = vmatpush.msra.mxu0 0.0
      %984 = vmatpush.msra.mxu0 0.0
      %985 = vmatpush.msra.mxu0 0.0
      %986 = vmatpush.msra.mxu0 0.0
      %987 = vmatpush.msra.mxu0 0.0
      %988 = vmatpush.msra.mxu0 0.0
      %989 = vmatpush.msra.mxu0 0.0
      %990 = vmatpush.msra.mxu0 0.0
      %991 = vmatpush.msra.mxu0 0.0
      %992 = vmatpush.msra.mxu0 0.0
      %993 = vmatpush.msra.mxu0 0.0
      %994 = vmatpush.msra.mxu0 0.0
      %995 = vmatpush.msra.mxu0 0.0
      %996 = vmatpush.msra.mxu0 0.0
      %997 = vmatpush.msra.mxu0 0.0
      %998 = vmatpush.msra.mxu0 %v981
      %999 = vmatmul.f32.gmra.mxu0 %v979
      %v1000 = vpop.f32.mrf.mxu0
      %v1001 = vadd.f32 0.0, %v1000
      %1002 = vdwg.mxu0
      %v1003 = vadd.f32 %v973, %v1001
      %s1004 = scalar_lea.vmem %s5, 56
      %v1005 = vld [vmem:[%s1004] sm:$0xff]
      %1006 = vrot.lane.b32.xlu0 %v795, 107
      %v1007 = vpop.permute.xlu0 %1006
      %v1009 = vsel %vm803, %v1005, 0
      %v1011 = vsel %vm593, %v1007, 0
      %1013 = vmatpush.msra.mxu0 0.0
      %1014 = vmatpush.msra.mxu0 0.0
      %1015 = vmatpush.msra.mxu0 0.0
      %1016 = vmatpush.msra.mxu0 0.0
      %1017 = vmatpush.msra.mxu0 0.0
      %1018 = vmatpush.msra.mxu0 0.0
      %1019 = vmatpush.msra.mxu0 0.0
      %1020 = vmatpush.msra.mxu0 0.0
      %1021 = vmatpush.msra.mxu0 0.0
      %1022 = vmatpush.msra.mxu0 0.0
      %1023 = vmatpush.msra.mxu0 0.0
      %1024 = vmatpush.msra.mxu0 0.0
      %1025 = vmatpush.msra.mxu0 0.0
      %1026 = vmatpush.msra.mxu0 0.0
      %1027 = vmatpush.msra.mxu0 0.0
      %1028 = vmatpush.msra.mxu0 %v1011
      %1029 = vmatmul.f32.gmra.mxu0 %v1009
      %v1030 = vpop.f32.mrf.mxu0
      %v1031 = vadd.f32 0.0, %v1030
      %1032 = vdwg.mxu0
      %v1033 = vadd.f32 %v1003, %v1031
      %s1034 = scalar_lea.vmem %s5, 64
      %v1035 = vld [vmem:[%s1034] sm:$0xff]
      %1036 = vrot.lane.b32.xlu0 %v795, 106
      %v1037 = vpop.permute.xlu0 %1036
      %v1039 = vsel %vm803, %v1035, 0
      %v1041 = vsel %vm593, %v1037, 0
      %1043 = vmatpush.msra.mxu0 0.0
      %1044 = vmatpush.msra.mxu0 0.0
      %1045 = vmatpush.msra.mxu0 0.0
      %1046 = vmatpush.msra.mxu0 0.0
      %1047 = vmatpush.msra.mxu0 0.0
      %1048 = vmatpush.msra.mxu0 0.0
      %1049 = vmatpush.msra.mxu0 0.0
      %1050 = vmatpush.msra.mxu0 0.0
      %1051 = vmatpush.msra.mxu0 0.0
      %1052 = vmatpush.msra.mxu0 0.0
      %1053 = vmatpush.msra.mxu0 0.0
      %1054 = vmatpush.msra.mxu0 0.0
      %1055 = vmatpush.msra.mxu0 0.0
      %1056 = vmatpush.msra.mxu0 0.0
      %1057 = vmatpush.msra.mxu0 0.0
      %1058 = vmatpush.msra.mxu0 %v1041
      %1059 = vmatmul.f32.gmra.mxu0 %v1039
      %v1060 = vpop.f32.mrf.mxu0
      %v1061 = vadd.f32 0.0, %v1060
      %1062 = vdwg.mxu0
      %v1063 = vadd.f32 %v1033, %v1061
      %v1064 = vld [vmem:[%s6] sm:$0xff]
      %1066 = vset.pattern.permute.xlu0 0
      %1067 = vperm.xlu0 %1066, %v1064
      %v1068 = vpop.permute.xlu0 %1067
      %v1070 = vmul.f32 %v1063, %v1068
      %v1071 = vld [vmem:[%s7] sm:$0xff]
      %1073 = vset.pattern.permute.xlu0 0
      %1074 = vperm.xlu0 %1073, %v1071
      %v1075 = vpop.permute.xlu0 %1074
      %v1077 = vadd.f32 %v1070, %v1075
      %v1078 = vmax.f32 %v1077, 0.0
      %1080 = vrot.lane.b32.xlu0 %v1078, 127
      %v1081 = vpop.permute.xlu0 %1080
      %v1083 = vmax.f32 %v1078, %v1081
      %1085 = vrot.lane.b32.xlu0 %v1083, 118
      %v1086 = vpop.permute.xlu0 %1085
      %v1088 = vmax.f32 %v1083, %v1086
      %v1089 = vld [vmem:[%s8] sm:$0xff]
      %v1090 = vld [vmem:[%s8 + $0x8] sm:$0xff]
      %v1091 = vld [vmem:[%s8 + $0x10] sm:$0xff]
      %v1092 = vld [vmem:[%s8 + $0x18] sm:$0xff]
      %v1093 = vld [vmem:[%s8 + $0x20] sm:$0xff]
      %v1094 = vld [vmem:[%s8 + $0x28] sm:$0xff]
      %v1095 = vld [vmem:[%s8 + $0x30] sm:$0xff]
      %v1096 = vld [vmem:[%s8 + $0x38] sm:$0xff]
      %v1097 = vld [vmem:[%s8 + $0x40] sm:$0x7]
      %vm1098 = vcmask 547840
      %v1100 = vsel %vm1098, %v1088, 0
      %vm1102 = vcmask 1042432
      %v1104 = vsel %vm1102, %v1097, 0
      %1106 = vmatpush.msra.mxu0 0.0
      %1107 = vmatpush.msra.mxu0 0.0
      %1108 = vmatpush.msra.mxu0 0.0
      %1109 = vmatpush.msra.mxu0 0.0
      %1110 = vmatpush.msra.mxu0 0.0
      %1111 = vmatpush.msra.mxu0 0.0
      %1112 = vmatpush.msra.mxu0 0.0
      %1113 = vmatpush.msra.mxu0 %v1104
      %1114 = vmatpush.msra.mxu0 %v1096
      %1115 = vmatpush.msra.mxu0 %v1095
      %1116 = vmatpush.msra.mxu0 %v1094
      %1117 = vmatpush.msra.mxu0 %v1093
      %1118 = vmatpush.msra.mxu0 %v1092
      %1119 = vmatpush.msra.mxu0 %v1091
      %1120 = vmatpush.msra.mxu0 %v1090
      %1121 = vmatpush.msra.mxu0 %v1089
      %1122 = vmatmul.f32.gmra.mxu0 %v1100
      %v1123 = vpop.f32.mrf.mxu0
      %v1124 = vadd.f32 0.0, %v1123
      %1125 = vdwg.mxu0
      %v1126 = vld [vmem:[%s9] sm:$0xff]
      %v1127 = vld [vmem:[%s9 + $0x8] sm:$0xff]
      %s1128 = scalar_lea.vmem %s9, 16
      %v1129 = vld [vmem:[%s1128] sm:$0xff]
      %v1130 = vld [vmem:[%s1128 + $0x8] sm:$0xff]
      %1132 = vrot.lane.b32.xlu0 %v1124, 127
      %v1133 = vpop.permute.xlu0 %1132
      %vm1135 = vcmask 64512
      %v1137 = vsel %vm1135, %v1129, 0
      %v1140 = vsel %vm1135, %v1130, 0
      %1142 = vmatpush.msra.mxu0 0.0
      %1143 = vmatpush.msra.mxu0 0.0
      %1144 = vmatpush.msra.mxu0 0.0
      %1145 = vmatpush.msra.mxu0 0.0
      %1146 = vmatpush.msra.mxu0 0.0
      %1147 = vmatpush.msra.mxu0 0.0
      %1148 = vmatpush.msra.mxu0 0.0
      %1149 = vmatpush.msra.mxu0 0.0
      %1150 = vmatpush.msra.mxu0 0.0
      %1151 = vmatpush.msra.mxu0 0.0
      %1152 = vmatpush.msra.mxu0 0.0
      %1153 = vmatpush.msra.mxu0 0.0
      %1154 = vmatpush.msra.mxu0 0.0
      %1155 = vmatpush.msra.mxu0 0.0
      %1156 = vmatpush.msra.mxu0 0.0
      %1157 = vmatpush.msra.mxu0 %v1133
      %1158 = vmatmul.f32.gmra.mxu0 %v1137
      %v1159 = vpop.f32.mrf.mxu0
      %v1160 = vadd.f32 0.0, %v1159
      %1161 = vmatmul.f32.gmra.mxu0 %v1140
      %v1162 = vpop.f32.mrf.mxu0
      %v1163 = vadd.f32 0.0, %v1162
      %1164 = vdwg.mxu0
      %v1166 = vsel %vm1135, %v1126, 0
      %v1169 = vsel %vm1135, %v1127, 0
      %1171 = vmatpush.msra.mxu0 0.0
      %1172 = vmatpush.msra.mxu0 0.0
      %1173 = vmatpush.msra.mxu0 0.0
      %1174 = vmatpush.msra.mxu0 0.0
      %1175 = vmatpush.msra.mxu0 0.0
      %1176 = vmatpush.msra.mxu0 0.0
      %1177 = vmatpush.msra.mxu0 0.0
      %1178 = vmatpush.msra.mxu0 0.0
      %1179 = vmatpush.msra.mxu0 0.0
      %1180 = vmatpush.msra.mxu0 0.0
      %1181 = vmatpush.msra.mxu0 0.0
      %1182 = vmatpush.msra.mxu0 0.0
      %1183 = vmatpush.msra.mxu0 0.0
      %1184 = vmatpush.msra.mxu0 0.0
      %1185 = vmatpush.msra.mxu0 0.0
      %1186 = vmatpush.msra.mxu0 %v1124
      %1187 = vmatmul.f32.gmra.mxu0 %v1166
      %v1188 = vpop.f32.mrf.mxu0
      %v1189 = vadd.f32 %v1160, %v1188
      %1190 = vmatmul.f32.gmra.mxu0 %v1169
      %v1191 = vpop.f32.mrf.mxu0
      %v1192 = vadd.f32 %v1163, %v1191
      %1193 = vdwg.mxu0
      %s1194 = scalar_lea.vmem %s9, 32
      %v1195 = vld [vmem:[%s1194] sm:$0xff]
      %v1196 = vld [vmem:[%s1194 + $0x8] sm:$0xff]
      %1197 = vrot.lane.b32.xlu0 %v1124, 126
      %v1198 = vpop.permute.xlu0 %1197
      %v1201 = vsel %vm1135, %v1195, 0
      %v1204 = vsel %vm1135, %v1196, 0
      %1206 = vmatpush.msra.mxu0 0.0
      %1207 = vmatpush.msra.mxu0 0.0
      %1208 = vmatpush.msra.mxu0 0.0
      %1209 = vmatpush.msra.mxu0 0.0
      %1210 = vmatpush.msra.mxu0 0.0
      %1211 = vmatpush.msra.mxu0 0.0
      %1212 = vmatpush.msra.mxu0 0.0
      %1213 = vmatpush.msra.mxu0 0.0
      %1214 = vmatpush.msra.mxu0 0.0
      %1215 = vmatpush.msra.mxu0 0.0
      %1216 = vmatpush.msra.mxu0 0.0
      %1217 = vmatpush.msra.mxu0 0.0
      %1218 = vmatpush.msra.mxu0 0.0
      %1219 = vmatpush.msra.mxu0 0.0
      %1220 = vmatpush.msra.mxu0 0.0
      %1221 = vmatpush.msra.mxu0 %v1198
      %1222 = vmatmul.f32.gmra.mxu0 %v1201
      %v1223 = vpop.f32.mrf.mxu0
      %v1224 = vadd.f32 0.0, %v1223
      %1225 = vmatmul.f32.gmra.mxu0 %v1204
      %v1226 = vpop.f32.mrf.mxu0
      %v1227 = vadd.f32 0.0, %v1226
      %1228 = vdwg.mxu0
      %v1229 = vadd.f32 %v1189, %v1224
      %v1230 = vadd.f32 %v1192, %v1227
      %s1231 = scalar_lea.vmem %s9, 48
      %v1232 = vld [vmem:[%s1231] sm:$0xff]
      %v1233 = vld [vmem:[%s1231 + $0x8] sm:$0xff]
      %1234 = vrot.lane.b32.xlu0 %v1124, 122
      %v1235 = vpop.permute.xlu0 %1234
      %v1238 = vsel %vm1135, %v1232, 0
      %v1241 = vsel %vm1135, %v1233, 0
      %1243 = vmatpush.msra.mxu0 0.0
      %1244 = vmatpush.msra.mxu0 0.0
      %1245 = vmatpush.msra.mxu0 0.0
      %1246 = vmatpush.msra.mxu0 0.0
      %1247 = vmatpush.msra.mxu0 0.0
      %1248 = vmatpush.msra.mxu0 0.0
      %1249 = vmatpush.msra.mxu0 0.0
      %1250 = vmatpush.msra.mxu0 0.0
      %1251 = vmatpush.msra.mxu0 0.0
      %1252 = vmatpush.msra.mxu0 0.0
      %1253 = vmatpush.msra.mxu0 0.0
      %1254 = vmatpush.msra.mxu0 0.0
      %1255 = vmatpush.msra.mxu0 0.0
      %1256 = vmatpush.msra.mxu0 0.0
      %1257 = vmatpush.msra.mxu0 0.0
      %1258 = vmatpush.msra.mxu0 %v1235
      %1259 = vmatmul.f32.gmra.mxu0 %v1238
      %v1260 = vpop.f32.mrf.mxu0
      %v1261 = vadd.f32 0.0, %v1260
      %1262 = vmatmul.f32.gmra.mxu0 %v1241
      %v1263 = vpop.f32.mrf.mxu0
      %v1264 = vadd.f32 0.0, %v1263
      %1265 = vdwg.mxu0
      %v1266 = vadd.f32 %v1229, %v1261
      %v1267 = vadd.f32 %v1230, %v1264
      %s1268 = scalar_lea.vmem %s9, 64
      %v1269 = vld [vmem:[%s1268] sm:$0xff]
      %v1270 = vld [vmem:[%s1268 + $0x8] sm:$0xff]
      %1271 = vrot.lane.b32.xlu0 %v1124, 121
      %v1272 = vpop.permute.xlu0 %1271
      %v1275 = vsel %vm1135, %v1269, 0
      %v1278 = vsel %vm1135, %v1270, 0
      %1280 = vmatpush.msra.mxu0 0.0
      %1281 = vmatpush.msra.mxu0 0.0
      %1282 = vmatpush.msra.mxu0 0.0
      %1283 = vmatpush.msra.mxu0 0.0
      %1284 = vmatpush.msra.mxu0 0.0
      %1285 = vmatpush.msra.mxu0 0.0
      %1286 = vmatpush.msra.mxu0 0.0
      %1287 = vmatpush.msra.mxu0 0.0
      %1288 = vmatpush.msra.mxu0 0.0
      %1289 = vmatpush.msra.mxu0 0.0
      %1290 = vmatpush.msra.mxu0 0.0
      %1291 = vmatpush.msra.mxu0 0.0
      %1292 = vmatpush.msra.mxu0 0.0
      %1293 = vmatpush.msra.mxu0 0.0
      %1294 = vmatpush.msra.mxu0 0.0
      %1295 = vmatpush.msra.mxu0 %v1272
      %1296 = vmatmul.f32.gmra.mxu0 %v1275
      %v1297 = vpop.f32.mrf.mxu0
      %v1298 = vadd.f32 0.0, %v1297
      %1299 = vmatmul.f32.gmra.mxu0 %v1278
      %v1300 = vpop.f32.mrf.mxu0
      %v1301 = vadd.f32 0.0, %v1300
      %1302 = vdwg.mxu0
      %v1303 = vadd.f32 %v1266, %v1298
      %v1304 = vadd.f32 %v1267, %v1301
      %s1305 = scalar_lea.vmem %s9, 80
      %v1306 = vld [vmem:[%s1305] sm:$0xff]
      %v1307 = vld [vmem:[%s1305 + $0x8] sm:$0xff]
      %1308 = vrot.lane.b32.xlu0 %v1124, 120
      %v1309 = vpop.permute.xlu0 %1308
      %v1312 = vsel %vm1135, %v1306, 0
      %v1315 = vsel %vm1135, %v1307, 0
      %1317 = vmatpush.msra.mxu0 0.0
      %1318 = vmatpush.msra.mxu0 0.0
      %1319 = vmatpush.msra.mxu0 0.0
      %1320 = vmatpush.msra.mxu0 0.0
      %1321 = vmatpush.msra.mxu0 0.0
      %1322 = vmatpush.msra.mxu0 0.0
      %1323 = vmatpush.msra.mxu0 0.0
      %1324 = vmatpush.msra.mxu0 0.0
      %1325 = vmatpush.msra.mxu0 0.0
      %1326 = vmatpush.msra.mxu0 0.0
      %1327 = vmatpush.msra.mxu0 0.0
      %1328 = vmatpush.msra.mxu0 0.0
      %1329 = vmatpush.msra.mxu0 0.0
      %1330 = vmatpush.msra.mxu0 0.0
      %1331 = vmatpush.msra.mxu0 0.0
      %1332 = vmatpush.msra.mxu0 %v1309
      %1333 = vmatmul.f32.gmra.mxu0 %v1312
      %v1334 = vpop.f32.mrf.mxu0
      %v1335 = vadd.f32 0.0, %v1334
      %1336 = vmatmul.f32.gmra.mxu0 %v1315
      %v1337 = vpop.f32.mrf.mxu0
      %v1338 = vadd.f32 0.0, %v1337
      %1339 = vdwg.mxu0
      %v1340 = vadd.f32 %v1303, %v1335
      %v1341 = vadd.f32 %v1304, %v1338
      %s1342 = scalar_lea.vmem %s9, 96
      %v1343 = vld [vmem:[%s1342] sm:$0xff]
      %v1344 = vld [vmem:[%s1342 + $0x8] sm:$0xff]
      %1345 = vrot.lane.b32.xlu0 %v1124, 116
      %v1346 = vpop.permute.xlu0 %1345
      %v1349 = vsel %vm1135, %v1343, 0
      %v1352 = vsel %vm1135, %v1344, 0
      %1354 = vmatpush.msra.mxu0 0.0
      %1355 = vmatpush.msra.mxu0 0.0
      %1356 = vmatpush.msra.mxu0 0.0
      %1357 = vmatpush.msra.mxu0 0.0
      %1358 = vmatpush.msra.mxu0 0.0
      %1359 = vmatpush.msra.mxu0 0.0
      %1360 = vmatpush.msra.mxu0 0.0
      %1361 = vmatpush.msra.mxu0 0.0
      %1362 = vmatpush.msra.mxu0 0.0
      %1363 = vmatpush.msra.mxu0 0.0
      %1364 = vmatpush.msra.mxu0 0.0
      %1365 = vmatpush.msra.mxu0 0.0
      %1366 = vmatpush.msra.mxu0 0.0
      %1367 = vmatpush.msra.mxu0 0.0
      %1368 = vmatpush.msra.mxu0 0.0
      %1369 = vmatpush.msra.mxu0 %v1346
      %1370 = vmatmul.f32.gmra.mxu0 %v1349
      %v1371 = vpop.f32.mrf.mxu0
      %v1372 = vadd.f32 0.0, %v1371
      %1373 = vmatmul.f32.gmra.mxu0 %v1352
      %v1374 = vpop.f32.mrf.mxu0
      %v1375 = vadd.f32 0.0, %v1374
      %1376 = vdwg.mxu0
      %v1377 = vadd.f32 %v1340, %v1372
      %v1378 = vadd.f32 %v1341, %v1375
      %s1379 = scalar_lea.vmem %s9, 112
      %v1380 = vld [vmem:[%s1379] sm:$0xff]
      %v1381 = vld [vmem:[%s1379 + $0x8] sm:$0xff]
      %1382 = vrot.lane.b32.xlu0 %v1124, 115
      %v1383 = vpop.permute.xlu0 %1382
      %v1386 = vsel %vm1135, %v1380, 0
      %v1389 = vsel %vm1135, %v1381, 0
      %1391 = vmatpush.msra.mxu0 0.0
      %1392 = vmatpush.msra.mxu0 0.0
      %1393 = vmatpush.msra.mxu0 0.0
      %1394 = vmatpush.msra.mxu0 0.0
      %1395 = vmatpush.msra.mxu0 0.0
      %1396 = vmatpush.msra.mxu0 0.0
      %1397 = vmatpush.msra.mxu0 0.0
      %1398 = vmatpush.msra.mxu0 0.0
      %1399 = vmatpush.msra.mxu0 0.0
      %1400 = vmatpush.msra.mxu0 0.0
      %1401 = vmatpush.msra.mxu0 0.0
      %1402 = vmatpush.msra.mxu0 0.0
      %1403 = vmatpush.msra.mxu0 0.0
      %1404 = vmatpush.msra.mxu0 0.0
      %1405 = vmatpush.msra.mxu0 0.0
      %1406 = vmatpush.msra.mxu0 %v1383
      %1407 = vmatmul.f32.gmra.mxu0 %v1386
      %v1408 = vpop.f32.mrf.mxu0
      %v1409 = vadd.f32 0.0, %v1408
      %1410 = vmatmul.f32.gmra.mxu0 %v1389
      %v1411 = vpop.f32.mrf.mxu0
      %v1412 = vadd.f32 0.0, %v1411
      %1413 = vdwg.mxu0
      %v1414 = vadd.f32 %v1377, %v1409
      %v1415 = vadd.f32 %v1378, %v1412
      %s1416 = scalar_lea.vmem %s9, 128
      %v1417 = vld [vmem:[%s1416] sm:$0xff]
      %v1418 = vld [vmem:[%s1416 + $0x8] sm:$0xff]
      %1419 = vrot.lane.b32.xlu0 %v1124, 114
      %v1420 = vpop.permute.xlu0 %1419
      %v1423 = vsel %vm1135, %v1417, 0
      %v1426 = vsel %vm1135, %v1418, 0
      %1428 = vmatpush.msra.mxu0 0.0
      %1429 = vmatpush.msra.mxu0 0.0
      %1430 = vmatpush.msra.mxu0 0.0
      %1431 = vmatpush.msra.mxu0 0.0
      %1432 = vmatpush.msra.mxu0 0.0
      %1433 = vmatpush.msra.mxu0 0.0
      %1434 = vmatpush.msra.mxu0 0.0
      %1435 = vmatpush.msra.mxu0 0.0
      %1436 = vmatpush.msra.mxu0 0.0
      %1437 = vmatpush.msra.mxu0 0.0
      %1438 = vmatpush.msra.mxu0 0.0
      %1439 = vmatpush.msra.mxu0 0.0
      %1440 = vmatpush.msra.mxu0 0.0
      %1441 = vmatpush.msra.mxu0 0.0
      %1442 = vmatpush.msra.mxu0 0.0
      %1443 = vmatpush.msra.mxu0 %v1420
      %1444 = vmatmul.f32.gmra.mxu0 %v1423
      %v1445 = vpop.f32.mrf.mxu0
      %v1446 = vadd.f32 0.0, %v1445
      %1447 = vmatmul.f32.gmra.mxu0 %v1426
      %v1448 = vpop.f32.mrf.mxu0
      %v1449 = vadd.f32 0.0, %v1448
      %1450 = vdwg.mxu0
      %v1451 = vadd.f32 %v1414, %v1446
      %v1452 = vadd.f32 %v1415, %v1449
      %v1453 = vld [vmem:[%s10] sm:$0xff]
      %v1454 = vld [vmem:[%s10 + $0x8] sm:$0xff]
      %1456 = vset.pattern.permute.xlu0 0
      %1457 = vperm.xlu0 %1456, %v1453
      %v1458 = vpop.permute.xlu0 %1457
      %1461 = vset.pattern.permute.xlu0 0
      %1462 = vperm.xlu0 %1461, %v1454
      %v1463 = vpop.permute.xlu0 %1462
      %v1465 = vmul.f32 %v1451, %v1458
      %v1466 = vmul.f32 %v1452, %v1463
      %v1467 = vld [vmem:[%s11] sm:$0xff]
      %v1468 = vld [vmem:[%s11 + $0x8] sm:$0xff]
      %1470 = vset.pattern.permute.xlu0 0
      %1471 = vperm.xlu0 %1470, %v1467
      %v1472 = vpop.permute.xlu0 %1471
      %1475 = vset.pattern.permute.xlu0 0
      %1476 = vperm.xlu0 %1475, %v1468
      %v1477 = vpop.permute.xlu0 %1476
      %v1479 = vadd.f32 %v1465, %v1472
      %v1480 = vadd.f32 %v1466, %v1477
      %v1481 = vmax.f32 %v1479, 0.0
      %v1482 = vmax.f32 %v1480, 0.0
      %1485 = vrot.lane.b32.xlu0 %v1481, 127
      %v1486 = vpop.permute.xlu0 %1485
      %1487 = vrot.lane.b32.xlu0 %v1482, 127
      %v1488 = vpop.permute.xlu0 %1487
      %v1491 = vmax.f32 %v1481, %v1486
      %v1492 = vmax.f32 %v1482, %v1488
      %1495 = vrot.lane.b32.xlu0 %v1491, 122
      %v1496 = vpop.permute.xlu0 %1495
      %1497 = vrot.lane.b32.xlu0 %v1492, 122
      %v1498 = vpop.permute.xlu0 %1497
      %v1501 = vmax.f32 %v1491, %v1496
      %v1502 = vmax.f32 %v1492, %v1498
      %1505 = vrot.lane.b32.xlu0 %v1501, 126
      %v1506 = vpop.permute.xlu0 %1505
      %1507 = vrot.lane.b32.xlu0 %v1502, 126
      %v1508 = vpop.permute.xlu0 %1507
      %1511 = vrot.lane.b32.xlu0 %v1501, 116
      %v1512 = vpop.permute.xlu0 %1511
      %1513 = vrot.lane.b32.xlu0 %v1502, 116
      %v1514 = vpop.permute.xlu0 %1513
      %1517 = vrot.lane.b32.xlu0 %v1501, 114
      %v1518 = vpop.permute.xlu0 %1517
      %1519 = vrot.lane.b32.xlu0 %v1502, 114
      %v1520 = vpop.permute.xlu0 %1519
      %v1523 = vld [vmem:[%s12] sm:$0xff]
      %v1524 = vld [vmem:[%s12 + $0x8] sm:$0xff]
      %v1525 = vld [vmem:[%s12 + $0x10] sm:$0xff]
      %v1526 = vld [vmem:[%s12 + $0x18] sm:$0xff]
      %vm1527 = vcmask 523264
      %v1529 = vsel %vm1527, %v1523, 0
      %v1532 = vsel %vm1527, %v1524, 0
      %v1535 = vsel %vm1527, %v1525, 0
      %v1538 = vsel %vm1527, %v1526, 0
      %1540 = vmatpush.msra.mxu0 0.0
      %1541 = vmatpush.msra.mxu0 0.0
      %1542 = vmatpush.msra.mxu0 0.0
      %1543 = vmatpush.msra.mxu0 0.0
      %1544 = vmatpush.msra.mxu0 0.0
      %1545 = vmatpush.msra.mxu0 0.0
      %1546 = vmatpush.msra.mxu0 0.0
      %1547 = vmatpush.msra.mxu0 0.0
      %1548 = vmatpush.msra.mxu0 %v1520
      %1549 = vmatpush.msra.mxu0 %v1518
      %1550 = vmatpush.msra.mxu0 %v1514
      %1551 = vmatpush.msra.mxu0 %v1512
      %1552 = vmatpush.msra.mxu0 %v1508
      %1553 = vmatpush.msra.mxu0 %v1506
      %1554 = vmatpush.msra.mxu0 %v1502
      %1555 = vmatpush.msra.mxu0 %v1501
      %1556 = vmatmul.f32.gmra.mxu0 %v1529
      %v1557 = vpop.f32.mrf.mxu0
      %v1558 = vadd.f32 0.0, %v1557
      %1559 = vmatmul.f32.gmra.mxu0 %v1532
      %v1560 = vpop.f32.mrf.mxu0
      %v1561 = vadd.f32 0.0, %v1560
      %1562 = vmatmul.f32.gmra.mxu0 %v1535
      %v1563 = vpop.f32.mrf.mxu0
      %v1564 = vadd.f32 0.0, %v1563
      %1565 = vmatmul.f32.gmra.mxu0 %v1538
      %v1566 = vpop.f32.mrf.mxu0
      %v1567 = vadd.f32 0.0, %v1566
      %1568 = vdwg.mxu0
      %v1569 = vld [vmem:[%s13] sm:$0xff]
      %v1570 = vld [vmem:[%s13 + $0x8] sm:$0xff]
      %v1571 = vld [vmem:[%s13 + $0x10] sm:$0xff]
      %v1572 = vld [vmem:[%s13 + $0x18] sm:$0xff]
      %v1573 = vmul.f32 %v1558, %v1569
      %v1574 = vmul.f32 %v1561, %v1570
      %v1575 = vmul.f32 %v1564, %v1571
      %v1576 = vmul.f32 %v1567, %v1572
      %v1577 = vld [vmem:[%s14] sm:$0xff]
      %v1578 = vld [vmem:[%s14 + $0x8] sm:$0xff]
      %v1579 = vld [vmem:[%s14 + $0x10] sm:$0xff]
      %v1580 = vld [vmem:[%s14 + $0x18] sm:$0xff]
      %v1581 = vadd.f32 %v1573, %v1577
      %v1582 = vadd.f32 %v1574, %v1578
      %v1583 = vadd.f32 %v1575, %v1579
      %v1584 = vadd.f32 %v1576, %v1580
      %v1585 = vmax.f32 %v1581, 0.0
      %v1586 = vmax.f32 %v1582, 0.0
      %v1587 = vmax.f32 %v1583, 0.0
      %v1588 = vmax.f32 %v1584, 0.0
      %v1589 = vld [vmem:[%s15] sm:$0xff]
      %v1590 = vld [vmem:[%s15 + $0x8] sm:$0xff]
      %v1591 = vld [vmem:[%s15 + $0x10] sm:$0xff]
      %v1592 = vld [vmem:[%s15 + $0x18] sm:$0xff]
      %v1593 = vld [vmem:[%s15 + $0x20] sm:$0xff]
      %v1594 = vld [vmem:[%s15 + $0x28] sm:$0xff]
      %v1595 = vld [vmem:[%s15 + $0x30] sm:$0xf]
      %v1596 = vld [vmem:[%s16] sm:$0xff]
      %v1597 = vld [vmem:[%s16 + $0x8] sm:$0xff]
      %v1598 = vld [vmem:[%s16 + $0x10] sm:$0xff]
      %v1599 = vld [vmem:[%s16 + $0x18] sm:$0xff]
      %v1600 = vld [vmem:[%s16 + $0x20] sm:$0xff]
      %v1601 = vld [vmem:[%s16 + $0x28] sm:$0xff]
      %v1602 = vld [vmem:[%s16 + $0x30] sm:$0xf]
      %vm1603 = vcmask 261120
      %v1605 = vsel %vm1603, %v1589, 0
      %v1608 = vsel %vm1603, %v1590, 0
      %v1611 = vsel %vm1603, %v1591, 0
      %v1614 = vsel %vm1603, %v1592, 0
      %v1617 = vsel %vm1603, %v1593, 0
      %v1620 = vsel %vm1603, %v1594, 0
      %v1623 = vsel %vm1603, %v1595, 0
      %1625 = vmatpush.msra.mxu0 0.0
      %1626 = vmatpush.msra.mxu0 0.0
      %1627 = vmatpush.msra.mxu0 0.0
      %1628 = vmatpush.msra.mxu0 0.0
      %1629 = vmatpush.msra.mxu0 0.0
      %1630 = vmatpush.msra.mxu0 0.0
      %1631 = vmatpush.msra.mxu0 0.0
      %1632 = vmatpush.msra.mxu0 0.0
      %1633 = vmatpush.msra.mxu0 0.0
      %1634 = vmatpush.msra.mxu0 0.0
      %1635 = vmatpush.msra.mxu0 0.0
      %1636 = vmatpush.msra.mxu0 0.0
      %1637 = vmatpush.msra.mxu0 %v1588
      %1638 = vmatpush.msra.mxu0 %v1587
      %1639 = vmatpush.msra.mxu0 %v1586
      %1640 = vmatpush.msra.mxu0 %v1585
      %1641 = vmatmul.f32.gmra.mxu0 %v1605
      %v1642 = vpop.f32.mrf.mxu0
      %v1643 = vadd.f32 %v1596, %v1642
      %1644 = vmatmul.f32.gmra.mxu0 %v1608
      %v1645 = vpop.f32.mrf.mxu0
      %v1646 = vadd.f32 %v1597, %v1645
      %1647 = vmatmul.f32.gmra.mxu0 %v1611
      %v1648 = vpop.f32.mrf.mxu0
      %v1649 = vadd.f32 %v1598, %v1648
      %1650 = vmatmul.f32.gmra.mxu0 %v1614
      %v1651 = vpop.f32.mrf.mxu0
      %v1652 = vadd.f32 %v1599, %v1651
      %1653 = vmatmul.f32.gmra.mxu0 %v1617
      %v1654 = vpop.f32.mrf.mxu0
      %v1655 = vadd.f32 %v1600, %v1654
      %1656 = vmatmul.f32.gmra.mxu0 %v1620
      %v1657 = vpop.f32.mrf.mxu0
      %v1658 = vadd.f32 %v1601, %v1657
      %1659 = vmatmul.f32.gmra.mxu0 %v1623
      %v1660 = vpop.f32.mrf.mxu0
      %v1661 = vadd.f32 %v1602, %v1660
      %1662 = vdwg.mxu0
      %vm1663 = vcmask 7168
      %1664 = vst.msk [vmem:[%s548] sm:$0xff] %vm1663, %v1643
      %1665 = vst.msk [vmem:[%s548 + $0x8] sm:$0xff] %vm1663, %v1646
      %1666 = vst.msk [vmem:[%s548 + $0x10] sm:$0xff] %vm1663, %v1649
      %1667 = vst.msk [vmem:[%s548 + $0x18] sm:$0xff] %vm1663, %v1652
      %1668 = vst.msk [vmem:[%s548 + $0x20] sm:$0xff] %vm1663, %v1655
      %1669 = vst.msk [vmem:[%s548 + $0x28] sm:$0xff] %vm1663, %v1658
      %vm1670 = vcmask 3072
      %1671 = vst.msk [vmem:[%s548 + $0x30] sm:$0xf] %vm1670, %v1661
      %p1672 = scmp.lt.s32.totalorder %s28, 1
      %s1673 = scalar_select %p1672, %s28, 1
      %s1674 = smul.addr %s1673, 7
      %s1675 = smul.addr %s1674, 8
      %s1676 = scalar_lea.vmem %s17, %s1675
      // Predicated region
      $region89: #{card_classifier.1} parent=87 // pred_check
        %p1677 = pneg %p408
      $region90: #{card_classifier.1} parent=87 // pred_check_branch
        %1679 = sbr.rel (%p1677) target = $region92
      $region91: #{card_classifier.1} parent=87 // pred_region
        _
      $region92: #{card_classifier.1} parent=87 // pred_fallthru
        _
    $region88: #{card_classifier.1} parent=5 // pred_fallthru
      _
    %p1680 = scmp.le.s32.totalorder 2, %s23
    // Predicated region
    $region93: #{card_classifier.1} parent=5 // pred_check
      %p1681 = pneg %p1680
    $region94: #{card_classifier.1} parent=5 // pred_check_branch
      %1683 = sbr.rel (%p1681) target = $region96
    $region95: #{card_classifier.1} parent=5 // pred_region
      %s1684 = ssub.s32 %s23, 2
      // Predicated region
      $region97: #{card_classifier.1} parent=95 // pred_check
        %p1685 = pneg %p414
      $region98: #{card_classifier.1} parent=95 // pred_check_branch
        %1687 = sbr.rel (%p1685) target = $region100
      $region99: #{card_classifier.1} parent=95 // pred_region
        %p1688 = scmp.lt.s32.totalorder %s29, 1
        %s1689 = scalar_select %p1688, %s29, 1
        %s1690 = smul.addr %s1689, 7
        %s1691 = smul.addr %s1690, 8
        %s1692 = scalar_lea.vmem %s17, %s1691
      $region100: #{card_classifier.1} parent=95 // pred_fallthru
        _
    $region96: #{card_classifier.1} parent=5 // pred_fallthru
      _
  $region6: #{card_classifier.1} parent=0 // loop_footer
    %s27 = sadd.s32 1, %s23
  $region7: #{card_classifier.1} parent=0 // loop_footer_branch
    %22 = sbr.rel target = $region3
  $region8: #{card_classifier.1} parent=0 // loop_exit
    _

</llo_original>
